<compile_context>
chip_gen: v6e
topology: v6e:2x2x1
jax: 0.10.0
libtpu: 0.0.40
codegen_flags: <defaults>
</compile_context>

<pallas_src>
import jax
import jax.numpy as jnp
import numpy as np
from jax.experimental import pallas as pl
from jax.experimental.pallas import tpu as pltpu

IN1, IN2, OUT = 20, 30, 40
KDIM = IN1 * IN2          # 600 (flattened outer-product dim, k = i*IN2 + j)
CIN = IN1 + IN2           # 50  (packed input rows: [x1 ; x2])


def _make_indicators():
    """R1[k, c] = 1 iff c == k//IN2 (selects x1[i]); R2[k, c] = 1 iff c == IN1 + k%IN2."""
    k = np.arange(KDIM)
    i_idx = k // IN2
    j_idx = k % IN2
    cols = np.arange(CIN)
    r1 = (cols[None, :] == i_idx[:, None]).astype(np.float32)          # (600, 50)
    r2 = (cols[None, :] == (IN1 + j_idx)[:, None]).astype(np.float32)  # (600, 50)
    return jnp.asarray(r1), jnp.asarray(r2)


def bilinear_kernel(x_ref, r1_ref, r2_ref, w_ref, b_ref, o_ref):
    # x_ref : (CIN, TN)   packed [x1; x2], batch on lanes
    # r1_ref: (KDIM, CIN) constant 0/1 indicator (resident across grid steps)
    # r2_ref: (KDIM, CIN) constant 0/1 indicator (resident)
    # w_ref : (OUT, KDIM) weight reshaped, lane-dense (resident)
    # b_ref : (OUT, 1)    bias (resident)
    # o_ref : (OUT, TN)   lane-dense output block
    xt = x_ref[...]                                                       # (50, TN)
    a = jnp.dot(r1_ref[...], xt, preferred_element_type=jnp.float32)     # (600, TN): x1[n, k//30]
    c = jnp.dot(r2_ref[...], xt, preferred_element_type=jnp.float32)     # (600, TN): x2[n, k%30]
    zt = a * c                                                            # zT[k,n] = x1[n,i]*x2[n,j]
    yt = jnp.dot(w_ref[...], zt, preferred_element_type=jnp.float32)     # (40, TN)
    o_ref[...] = (yt + b_ref[...]).astype(o_ref.dtype)


def _round_up(v, m):
    return ((v + m - 1) // m) * m


def bilinear(x1, x2, weight, bias, *, tile_n=2048):
    """x1: (N, 20), x2: (N, 30), weight: (40, 20, 30), bias: (40,) -> (N, 40)."""
    n = x1.shape[0]
    dtype = x1.dtype

    # One-time layout work outside the kernel.
    xt = jnp.concatenate([x1, x2], axis=1).T            # (50, N)  batch on lanes
    wt = weight.reshape(OUT, KDIM).astype(dtype)        # (40, 600): Wf[o, i*30+j] = W[o,i,j]
    bt = bias.reshape(OUT, 1).astype(dtype)             # (40, 1)
    r1, r2 = _make_indicators()
    r1 = r1.astype(dtype)
    r2 = r2.astype(dtype)

    # Lane-tile selection: full-batch block for small N; otherwise a
    # multiple-of-128 tile with >=2 grid steps (lets v7x shard across its 2 TCs).
    if n <= 256:
        tn = n
    else:
        tn = min(tile_n, _round_up(pl.cdiv(n, 2), 128))

    grid = (pl.cdiv(n, tn),)
    out_t = pl.pallas_call(
        bilinear_kernel,
        out_shape=jax.ShapeDtypeStruct((OUT, n), dtype),
        grid=grid,
        in_specs=[
            pl.BlockSpec((CIN, tn), lambda i: (0, i)),      # packed inputs (tiled on lanes)
            pl.BlockSpec((KDIM, CIN), lambda i: (0, 0)),    # R1 (resident)
            pl.BlockSpec((KDIM, CIN), lambda i: (0, 0)),    # R2 (resident)
            pl.BlockSpec((OUT, KDIM), lambda i: (0, 0)),    # weight (resident)
            pl.BlockSpec((OUT, 1), lambda i: (0, 0)),       # bias (resident)
        ],
        out_specs=pl.BlockSpec((OUT, tn), lambda i: (0, i)),
        compiler_params=pltpu.CompilerParams(
            dimension_semantics=("parallel",),
            vmem_limit_bytes=40 << 20,
        ),
    )(xt, r1, r2, wt, bt)

    # Restore the module's (N, OUT) orientation outside the kernel.
    return out_t.T


if __name__ == "__main__":
    key = jax.random.PRNGKey(0)
    k1, k2, kw, kb = jax.random.split(key, 4)

    N = 8
    x1 = jax.random.normal(k1, (N, IN1), dtype=jnp.float32)
    x2 = jax.random.normal(k2, (N, IN2), dtype=jnp.float32)

    # Parameter init mirroring PyTorch nn.Bilinear default:
    # uniform(-1/sqrt(in1_features), 1/sqrt(in1_features)).
    bound = 1.0 / (IN1 ** 0.5)
    weight = jax.random.uniform(kw, (OUT, IN1, IN2), dtype=jnp.float32,
                                minval=-bound, maxval=bound)
    bias = jax.random.uniform(kb, (OUT,), dtype=jnp.float32,
                              minval=-bound, maxval=bound)

    out = jax.block_until_ready(bilinear(x1, x2, weight, bias))

    # Float64 numpy reference (exact contraction) for the correctness check.
    ref = np.einsum("ni,oij,nj->no",
                    np.asarray(x1, dtype=np.float64),
                    np.asarray(weight, dtype=np.float64),
                    np.asarray(x2, dtype=np.float64)) + np.asarray(bias, dtype=np.float64)

    assert out.shape == (N, OUT)
    assert np.allclose(np.asarray(out, dtype=np.float64), ref,
                       atol=2e-3, rtol=2e-3), "mismatch vs reference"

    print("KERNEL_OK")
</pallas_src>

<mosaic_0001>
module attributes {stable_mosaic.version = 11 : i64} {
  func.func @bilinear_kernel(%arg0: i32, %arg1: memref<50x8xf32, #tpu.memory_space<vmem>>, %arg2: memref<600x50xf32, #tpu.memory_space<vmem>>, %arg3: memref<600x50xf32, #tpu.memory_space<vmem>>, %arg4: memref<40x600xf32, #tpu.memory_space<vmem>>, %arg5: memref<40x1xf32, #tpu.memory_space<vmem>>, %arg6: memref<40x8xf32, #tpu.memory_space<vmem>>) attributes {dimension_semantics = [#tpu.dimension_semantics<parallel>], iteration_bounds = array<i64: 1>, scalar_prefetch = 0 : i64, scratch_operands = 0 : i64, tpu.core_type = #tpu.core_type<tc>, window_params = [{transform_indices = @transform_0, window_bounds = array<i64: 50, 8>}, {pipeline_mode = #tpu.pipeline_mode<synchronous>, transform_indices = @transform_1, window_bounds = array<i64: 600, 50>}, {pipeline_mode = #tpu.pipeline_mode<synchronous>, transform_indices = @transform_2, window_bounds = array<i64: 600, 50>}, {pipeline_mode = #tpu.pipeline_mode<synchronous>, transform_indices = @transform_3, window_bounds = array<i64: 40, 600>}, {pipeline_mode = #tpu.pipeline_mode<synchronous>, transform_indices = @transform_4, window_bounds = array<i64: 40, 1>}, {transform_indices = @transform_5, window_bounds = array<i64: 40, 8>}]} {
    %c0 = arith.constant 0 : index
    %c0_0 = arith.constant 0 : index
    %0 = vector.load %arg1[%c0, %c0_0] : memref<50x8xf32, #tpu.memory_space<vmem>>, vector<50x8xf32>
    %c0_1 = arith.constant 0 : index
    %c0_2 = arith.constant 0 : index
    %1 = vector.load %arg2[%c0_1, %c0_2] : memref<600x50xf32, #tpu.memory_space<vmem>>, vector<600x50xf32>
    %cst = arith.constant dense<0.000000e+00> : vector<600x8xf32>
    %2 = tpu.matmul %1, %0, %cst {dimension_numbers = #tpu.dot_dimension_numbers<[1], [0], [0], [1], [0, 0, 1, 1], [], []>} : vector<600x50xf32>, vector<50x8xf32>, vector<600x8xf32> -> vector<600x8xf32>
    %c0_3 = arith.constant 0 : index
    %c0_4 = arith.constant 0 : index
    %3 = vector.load %arg3[%c0_3, %c0_4] : memref<600x50xf32, #tpu.memory_space<vmem>>, vector<600x50xf32>
    %cst_5 = arith.constant dense<0.000000e+00> : vector<600x8xf32>
    %4 = tpu.matmul %3, %0, %cst_5 {dimension_numbers = #tpu.dot_dimension_numbers<[1], [0], [0], [1], [0, 0, 1, 1], [], []>} : vector<600x50xf32>, vector<50x8xf32>, vector<600x8xf32> -> vector<600x8xf32>
    %5 = arith.mulf %2, %4 : vector<600x8xf32>
    %c0_6 = arith.constant 0 : index
    %c0_7 = arith.constant 0 : index
    %6 = vector.load %arg4[%c0_6, %c0_7] : memref<40x600xf32, #tpu.memory_space<vmem>>, vector<40x600xf32>
    %cst_8 = arith.constant dense<0.000000e+00> : vector<40x8xf32>
    %7 = tpu.matmul %6, %5, %cst_8 {dimension_numbers = #tpu.dot_dimension_numbers<[1], [0], [0], [1], [0, 0, 1, 1], [], []>} : vector<40x600xf32>, vector<600x8xf32>, vector<40x8xf32> -> vector<40x8xf32>
    %c0_9 = arith.constant 0 : index
    %c0_10 = arith.constant 0 : index
    %8 = vector.load %arg5[%c0_9, %c0_10] : memref<40x1xf32, #tpu.memory_space<vmem>>, vector<40x1xf32>
    %9 = vector.broadcast %8 : vector<40x1xf32> to vector<40x8xf32>
    %10 = arith.addf %7, %9 : vector<40x8xf32>
    %c0_11 = arith.constant 0 : index
    %c0_12 = arith.constant 0 : index
    %11 = vector.load %arg6[%c0_11, %c0_12] : memref<40x8xf32, #tpu.memory_space<vmem>>, vector<40x8xf32>
    tpu.vector_store %arg6[%c0_11, %c0_12], %10 {strides = array<i32>} : memref<40x8xf32, #tpu.memory_space<vmem>>, vector<40x8xf32>,
    return
  }
  func.func @transform_0(%arg0: i32) -> (i32, i32) {
    %c0_i32 = arith.constant 0 : i32
    %c0_i32_0 = arith.constant 0 : i32
    return %c0_i32, %arg0 : i32, i32
  }
  func.func @transform_1(%arg0: i32) -> (i32, i32) {
    %c0_i32 = arith.constant 0 : i32
    %c0_i32_0 = arith.constant 0 : i32
    %c0_i32_1 = arith.constant 0 : i32
    return %c0_i32, %c0_i32_0 : i32, i32
  }
  func.func @transform_2(%arg0: i32) -> (i32, i32) {
    %c0_i32 = arith.constant 0 : i32
    %c0_i32_0 = arith.constant 0 : i32
    %c0_i32_1 = arith.constant 0 : i32
    return %c0_i32, %c0_i32_0 : i32, i32
  }
  func.func @transform_3(%arg0: i32) -> (i32, i32) {
    %c0_i32 = arith.constant 0 : i32
    %c0_i32_0 = arith.constant 0 : i32
    %c0_i32_1 = arith.constant 0 : i32
    return %c0_i32, %c0_i32_0 : i32, i32
  }
  func.func @transform_4(%arg0: i32) -> (i32, i32) {
    %c0_i32 = arith.constant 0 : i32
    %c0_i32_0 = arith.constant 0 : i32
    %c0_i32_1 = arith.constant 0 : i32
    return %c0_i32, %c0_i32_0 : i32, i32
  }
  func.func @transform_5(%arg0: i32) -> (i32, i32) {
    %c0_i32 = arith.constant 0 : i32
    %c0_i32_0 = arith.constant 0 : i32
    return %c0_i32, %arg0 : i32, i32
  }
}

</mosaic_0001>

<llo_original>
// kernel: tpu_custom_call.1
$region0: #{tpu_custom_call.1}
  #allocation0 [shape = 'u32[]', space=smem, size = 0x4, offset = 0x4, fixed_abs, tag = 'smem constant byte address 0x4 - core index']
  #allocation1 [shape = 'u32[144,128]{1,0:T(1,128)}', space=vmem, size = 0x12000, scoped, tag = 'internal scratch']
  %s0 = inlined_call_operand.vmem [shape: f32[50,8], index: 0, kind: input, shape index: {}]
  %s1 = inlined_call_operand.vmem [shape: f32[600,50], index: 1, kind: input, shape index: {}]
  %s2 = inlined_call_operand.vmem [shape: f32[600,50], index: 2, kind: input, shape index: {}]
  %s3 = inlined_call_operand.vmem [shape: f32[40,600], index: 3, kind: input, shape index: {}]
  %s4 = inlined_call_operand.vmem [shape: f32[40,1], index: 4, kind: input, shape index: {}]
  %s5 = inlined_call_operand.vmem [shape: f32[40,8], index: 5, kind: output, shape index: {}]
  %s6 = sld [smem:[#allocation0]]
  $region30: #{tpu_custom_call.1} parent=0
    _
  %s8 = ssub.s32 1, %s6
  %s9 = scalar_select 0, %s8, %s6
  // Predicated region
  $region2: #{tpu_custom_call.1} parent=0 // pred_check
    _
  $region3: #{tpu_custom_call.1} parent=0 // pred_check_branch
    %11 = sbr.rel (0) target = $region5
  $region4: #{tpu_custom_call.1} parent=0 // pred_region
    _
  $region5: #{tpu_custom_call.1} parent=0 // pred_fallthru
    _
  // Predicated region
  $region6: #{tpu_custom_call.1} parent=0 // pred_check
    _
  $region7: #{tpu_custom_call.1} parent=0 // pred_check_branch
    %13 = sbr.rel (0) target = $region9
  $region8: #{tpu_custom_call.1} parent=0 // pred_region
    _
  $region9: #{tpu_custom_call.1} parent=0 // pred_fallthru
    _
  // Predicated region
  $region10: #{tpu_custom_call.1} parent=0 // pred_check
    _
  $region11: #{tpu_custom_call.1} parent=0 // pred_check_branch
    %15 = sbr.rel (0) target = $region13
  $region12: #{tpu_custom_call.1} parent=0 // pred_region
    _
  $region13: #{tpu_custom_call.1} parent=0 // pred_fallthru
    _
  // Predicated region
  $region14: #{tpu_custom_call.1} parent=0 // pred_check
    _
  $region15: #{tpu_custom_call.1} parent=0 // pred_check_branch
    %17 = sbr.rel (0) target = $region17
  $region16: #{tpu_custom_call.1} parent=0 // pred_region
    _
  $region17: #{tpu_custom_call.1} parent=0 // pred_fallthru
    _
  // Predicated region
  $region18: #{tpu_custom_call.1} parent=0 // pred_check
    _
  $region19: #{tpu_custom_call.1} parent=0 // pred_check_branch
    %19 = sbr.rel (0) target = $region21
  $region20: #{tpu_custom_call.1} parent=0 // pred_region
    _
  $region21: #{tpu_custom_call.1} parent=0 // pred_fallthru
    _
  %v20 = vld [vmem:[%s0] sm:$0xff]
  %v21 = vld [vmem:[%s0 + $0x8] sm:$0xff]
  %v22 = vld [vmem:[%s0 + $0x10] sm:$0xff]
  %v23 = vld [vmem:[%s0 + $0x18] sm:$0xff]
  %v24 = vld [vmem:[%s0 + $0x20] sm:$0xff]
  %v25 = vld [vmem:[%s0 + $0x28] sm:$0xff]
  %v26 = vld [vmem:[%s0 + $0x30] sm:$0x3]
  %v27 = vld [vmem:[%s1] sm:$0xff]
  %v28 = vld [vmem:[%s1 + $0x8] sm:$0xff]
  %v29 = vld [vmem:[%s1 + $0x10] sm:$0xff]
  %v30 = vld [vmem:[%s1 + $0x18] sm:$0xff]
  %v31 = vld [vmem:[%s1 + $0x20] sm:$0xff]
  %v32 = vld [vmem:[%s1 + $0x28] sm:$0xff]
  %v33 = vld [vmem:[%s1 + $0x30] sm:$0xff]
  %v34 = vld [vmem:[%s1 + $0x38] sm:$0xff]
  %v35 = vld [vmem:[%s1 + $0x40] sm:$0xff]
  %v36 = vld [vmem:[%s1 + $0x48] sm:$0xff]
  %v37 = vld [vmem:[%s1 + $0x50] sm:$0xff]
  %v38 = vld [vmem:[%s1 + $0x58] sm:$0xff]
  %v39 = vld [vmem:[%s1 + $0x60] sm:$0xff]
  %v40 = vld [vmem:[%s1 + $0x68] sm:$0xff]
  %v41 = vld [vmem:[%s1 + $0x70] sm:$0xff]
  %v42 = vld [vmem:[%s1 + $0x78] sm:$0xff]
  %v43 = vld [vmem:[%s1 + $0x80] sm:$0xff]
  %v44 = vld [vmem:[%s1 + $0x88] sm:$0xff]
  %v45 = vld [vmem:[%s1 + $0x90] sm:$0xff]
  %v46 = vld [vmem:[%s1 + $0x98] sm:$0xff]
  %v47 = vld [vmem:[%s1 + $0xa0] sm:$0xff]
  %v48 = vld [vmem:[%s1 + $0xa8] sm:$0xff]
  %v49 = vld [vmem:[%s1 + $0xb0] sm:$0xff]
  %v50 = vld [vmem:[%s1 + $0xb8] sm:$0xff]
  %v51 = vld [vmem:[%s1 + $0xc0] sm:$0xff]
  %v52 = vld [vmem:[%s1 + $0xc8] sm:$0xff]
  %v53 = vld [vmem:[%s1 + $0xd0] sm:$0xff]
  %v54 = vld [vmem:[%s1 + $0xd8] sm:$0xff]
  %v55 = vld [vmem:[%s1 + $0xe0] sm:$0xff]
  %v56 = vld [vmem:[%s1 + $0xe8] sm:$0xff]
  %v57 = vld [vmem:[%s1 + $0xf0] sm:$0xff]
  %v58 = vld [vmem:[%s1 + $0xf8] sm:$0xff]
  %v59 = vld [vmem:[%s1 + $0x100] sm:$0xff]
  %v60 = vld [vmem:[%s1 + $0x108] sm:$0xff]
  %v61 = vld [vmem:[%s1 + $0x110] sm:$0xff]
  %v62 = vld [vmem:[%s1 + $0x118] sm:$0xff]
  %v63 = vld [vmem:[%s1 + $0x120] sm:$0xff]
  %v64 = vld [vmem:[%s1 + $0x128] sm:$0xff]
  %v65 = vld [vmem:[%s1 + $0x130] sm:$0xff]
  %v66 = vld [vmem:[%s1 + $0x138] sm:$0xff]
  %v67 = vld [vmem:[%s1 + $0x140] sm:$0xff]
  %v68 = vld [vmem:[%s1 + $0x148] sm:$0xff]
  %v69 = vld [vmem:[%s1 + $0x150] sm:$0xff]
  %v70 = vld [vmem:[%s1 + $0x158] sm:$0xff]
  %v71 = vld [vmem:[%s1 + $0x160] sm:$0xff]
  %v72 = vld [vmem:[%s1 + $0x168] sm:$0xff]
  %v73 = vld [vmem:[%s1 + $0x170] sm:$0xff]
  %v74 = vld [vmem:[%s1 + $0x178] sm:$0xff]
  %v75 = vld [vmem:[%s1 + $0x180] sm:$0xff]
  %v76 = vld [vmem:[%s1 + $0x188] sm:$0xff]
  %v77 = vld [vmem:[%s1 + $0x190] sm:$0xff]
  %v78 = vld [vmem:[%s1 + $0x198] sm:$0xff]
  %v79 = vld [vmem:[%s1 + $0x1a0] sm:$0xff]
  %v80 = vld [vmem:[%s1 + $0x1a8] sm:$0xff]
  %v81 = vld [vmem:[%s1 + $0x1b0] sm:$0xff]
  %v82 = vld [vmem:[%s1 + $0x1b8] sm:$0xff]
  %v83 = vld [vmem:[%s1 + $0x1c0] sm:$0xff]
  %v84 = vld [vmem:[%s1 + $0x1c8] sm:$0xff]
  %v85 = vld [vmem:[%s1 + $0x1d0] sm:$0xff]
  %v86 = vld [vmem:[%s1 + $0x1d8] sm:$0xff]
  %v87 = vld [vmem:[%s1 + $0x1e0] sm:$0xff]
  %v88 = vld [vmem:[%s1 + $0x1e8] sm:$0xff]
  %v89 = vld [vmem:[%s1 + $0x1f0] sm:$0xff]
  %v90 = vld [vmem:[%s1 + $0x1f8] sm:$0xff]
  %v91 = vld [vmem:[%s1 + $0x200] sm:$0xff]
  %v92 = vld [vmem:[%s1 + $0x208] sm:$0xff]
  %v93 = vld [vmem:[%s1 + $0x210] sm:$0xff]
  %v94 = vld [vmem:[%s1 + $0x218] sm:$0xff]
  %v95 = vld [vmem:[%s1 + $0x220] sm:$0xff]
  %v96 = vld [vmem:[%s1 + $0x228] sm:$0xff]
  %v97 = vld [vmem:[%s1 + $0x230] sm:$0xff]
  %v98 = vld [vmem:[%s1 + $0x238] sm:$0xff]
  %v99 = vld [vmem:[%s1 + $0x240] sm:$0xff]
  %v100 = vld [vmem:[%s1 + $0x248] sm:$0xff]
  %v101 = vld [vmem:[%s1 + $0x250] sm:$0xff]
  %vm102 = vcmask 408576
  %v104 = vsel %vm102, %v27, 0
  %v107 = vsel %vm102, %v28, 0
  %v110 = vsel %vm102, %v29, 0
  %v113 = vsel %vm102, %v30, 0
  %v116 = vsel %vm102, %v31, 0
  %v119 = vsel %vm102, %v32, 0
  %v122 = vsel %vm102, %v33, 0
  %v125 = vsel %vm102, %v34, 0
  %v128 = vsel %vm102, %v35, 0
  %v131 = vsel %vm102, %v36, 0
  %v134 = vsel %vm102, %v37, 0
  %v137 = vsel %vm102, %v38, 0
  %v140 = vsel %vm102, %v39, 0
  %v143 = vsel %vm102, %v40, 0
  %v146 = vsel %vm102, %v41, 0
  %v149 = vsel %vm102, %v42, 0
  %v152 = vsel %vm102, %v43, 0
  %v155 = vsel %vm102, %v44, 0
  %v158 = vsel %vm102, %v45, 0
  %v161 = vsel %vm102, %v46, 0
  %v164 = vsel %vm102, %v47, 0
  %v167 = vsel %vm102, %v48, 0
  %v170 = vsel %vm102, %v49, 0
  %v173 = vsel %vm102, %v50, 0
  %v176 = vsel %vm102, %v51, 0
  %v179 = vsel %vm102, %v52, 0
  %v182 = vsel %vm102, %v53, 0
  %v185 = vsel %vm102, %v54, 0
  %v188 = vsel %vm102, %v55, 0
  %v191 = vsel %vm102, %v56, 0
  %v194 = vsel %vm102, %v57, 0
  %v197 = vsel %vm102, %v58, 0
  %v200 = vsel %vm102, %v59, 0
  %v203 = vsel %vm102, %v60, 0
  %v206 = vsel %vm102, %v61, 0
  %v209 = vsel %vm102, %v62, 0
  %v212 = vsel %vm102, %v63, 0
  %v215 = vsel %vm102, %v64, 0
  %v218 = vsel %vm102, %v65, 0
  %v221 = vsel %vm102, %v66, 0
  %v224 = vsel %vm102, %v67, 0
  %v227 = vsel %vm102, %v68, 0
  %v230 = vsel %vm102, %v69, 0
  %v233 = vsel %vm102, %v70, 0
  %v236 = vsel %vm102, %v71, 0
  %v239 = vsel %vm102, %v72, 0
  %v242 = vsel %vm102, %v73, 0
  %v245 = vsel %vm102, %v74, 0
  %v248 = vsel %vm102, %v75, 0
  %v251 = vsel %vm102, %v76, 0
  %v254 = vsel %vm102, %v77, 0
  %v257 = vsel %vm102, %v78, 0
  %v260 = vsel %vm102, %v79, 0
  %v263 = vsel %vm102, %v80, 0
  %v266 = vsel %vm102, %v81, 0
  %v269 = vsel %vm102, %v82, 0
  %v272 = vsel %vm102, %v83, 0
  %v275 = vsel %vm102, %v84, 0
  %v278 = vsel %vm102, %v85, 0
  %v281 = vsel %vm102, %v86, 0
  %v284 = vsel %vm102, %v87, 0
  %v287 = vsel %vm102, %v88, 0
  %v290 = vsel %vm102, %v89, 0
  %v293 = vsel %vm102, %v90, 0
  %v296 = vsel %vm102, %v91, 0
  %v299 = vsel %vm102, %v92, 0
  %v302 = vsel %vm102, %v93, 0
  %v305 = vsel %vm102, %v94, 0
  %v308 = vsel %vm102, %v95, 0
  %v311 = vsel %vm102, %v96, 0
  %v314 = vsel %vm102, %v97, 0
  %v317 = vsel %vm102, %v98, 0
  %v320 = vsel %vm102, %v99, 0
  %v323 = vsel %vm102, %v100, 0
  %v326 = vsel %vm102, %v101, 0
  %vm328 = vcmask 1041408
  %v330 = vsel %vm328, %v26, 0
  %332 = vmatprep.subr.mxu0 0.0
  %333 = vmatpush1.msra.mxu0 0.0
  %334 = vmatprep.subr.mxu0 0.0
  %335 = vmatpush1.msra.mxu0 0.0
  %336 = vmatprep.subr.mxu0 0.0
  %337 = vmatpush1.msra.mxu0 0.0
  %338 = vmatprep.subr.mxu0 0.0
  %339 = vmatpush1.msra.mxu0 0.0
  %340 = vmatprep.subr.mxu0 0.0
  %341 = vmatpush1.msra.mxu0 0.0
  %342 = vmatprep.subr.mxu0 0.0
  %343 = vmatpush1.msra.mxu0 0.0
  %344 = vmatprep.subr.mxu0 0.0
  %345 = vmatpush1.msra.mxu0 0.0
  %346 = vmatprep.subr.mxu0 0.0
  %347 = vmatpush1.msra.mxu0 0.0
  %348 = vmatprep.subr.mxu0 0.0
  %349 = vmatpush1.msra.mxu0 0.0
  %350 = vmatprep.subr.mxu0 0.0
  %351 = vmatpush1.msra.mxu0 %v330
  %352 = vmatprep.subr.mxu0 0.0
  %353 = vmatpush1.msra.mxu0 %v25
  %354 = vmatprep.subr.mxu0 0.0
  %355 = vmatpush1.msra.mxu0 %v24
  %356 = vmatprep.subr.mxu0 0.0
  %357 = vmatpush1.msra.mxu0 %v23
  %358 = vmatprep.subr.mxu0 0.0
  %359 = vmatpush1.msra.mxu0 %v22
  %360 = vmatprep.subr.mxu0 0.0
  %361 = vmatpush1.msra.mxu0 %v21
  %362 = vmatprep.subr.mxu0 0.0
  %363 = vmatpush1.msra.mxu0 %v20
  %364 = vmatprep.subr.mxu0 0.0
  %365 = vmatpush2.msra.mxu0 0.0
  %366 = vmatprep.subr.mxu0 0.0
  %367 = vmatpush2.msra.mxu0 0.0
  %368 = vmatprep.subr.mxu0 0.0
  %369 = vmatpush2.msra.mxu0 0.0
  %370 = vmatprep.subr.mxu0 0.0
  %371 = vmatpush2.msra.mxu0 0.0
  %372 = vmatprep.subr.mxu0 0.0
  %373 = vmatpush2.msra.mxu0 0.0
  %374 = vmatprep.subr.mxu0 0.0
  %375 = vmatpush2.msra.mxu0 0.0
  %376 = vmatprep.subr.mxu0 0.0
  %377 = vmatpush2.msra.mxu0 0.0
  %378 = vmatprep.subr.mxu0 0.0
  %379 = vmatpush2.msra.mxu0 0.0
  %380 = vmatprep.subr.mxu0 0.0
  %381 = vmatpush2.msra.mxu0 0.0
  %382 = vmatprep.subr.mxu0 0.0
  %383 = vmatpush2.msra.mxu0 0.0
  %384 = vmatprep.subr.mxu0 0.0
  %385 = vmatpush2.msra.mxu0 0.0
  %386 = vmatprep.subr.mxu0 0.0
  %387 = vmatpush2.msra.mxu0 0.0
  %388 = vmatprep.subr.mxu0 0.0
  %389 = vmatpush2.msra.mxu0 0.0
  %390 = vmatprep.subr.mxu0 0.0
  %391 = vmatpush2.msra.mxu0 0.0
  %392 = vmatprep.subr.mxu0 0.0
  %393 = vmatpush2.msra.mxu0 0.0
  %394 = vmatprep.subr.mxu0 0.0
  %395 = vmatpush2.msra.mxu0 0.0
  %396 = vmatprep.mubr.f32.mxu0 0.0
  %397 = vmatmul.mubr.f32.gmra.mxu0 %v104
  %v398 = vpop.f32.mrf.mxu0
  %v399 = vadd.f32 0.0, %v398
  %v400 = vpop.f32.mrf.mxu0
  %401 = vmatprep.mubr.f32.mxu0 0.0
  %402 = vmatmul.mubr.f32.gmra.mxu0 %v107
  %v403 = vpop.f32.mrf.mxu0
  %v404 = vadd.f32 0.0, %v403
  %v405 = vpop.f32.mrf.mxu0
  %406 = vmatprep.mubr.f32.mxu0 0.0
  %407 = vmatmul.mubr.f32.gmra.mxu0 %v110
  %v408 = vpop.f32.mrf.mxu0
  %v409 = vadd.f32 0.0, %v408
  %v410 = vpop.f32.mrf.mxu0
  %411 = vmatprep.mubr.f32.mxu0 0.0
  %412 = vmatmul.mubr.f32.gmra.mxu0 %v113
  %v413 = vpop.f32.mrf.mxu0
  %v414 = vadd.f32 0.0, %v413
  %v415 = vpop.f32.mrf.mxu0
  %416 = vmatprep.mubr.f32.mxu0 0.0
  %417 = vmatmul.mubr.f32.gmra.mxu0 %v116
  %v418 = vpop.f32.mrf.mxu0
  %v419 = vadd.f32 0.0, %v418
  %v420 = vpop.f32.mrf.mxu0
  %421 = vmatprep.mubr.f32.mxu0 0.0
  %422 = vmatmul.mubr.f32.gmra.mxu0 %v119
  %v423 = vpop.f32.mrf.mxu0
  %v424 = vadd.f32 0.0, %v423
  %v425 = vpop.f32.mrf.mxu0
  %426 = vmatprep.mubr.f32.mxu0 0.0
  %427 = vmatmul.mubr.f32.gmra.mxu0 %v122
  %v428 = vpop.f32.mrf.mxu0
  %v429 = vadd.f32 0.0, %v428
  %v430 = vpop.f32.mrf.mxu0
  %431 = vmatprep.mubr.f32.mxu0 0.0
  %432 = vmatmul.mubr.f32.gmra.mxu0 %v125
  %v433 = vpop.f32.mrf.mxu0
  %v434 = vadd.f32 0.0, %v433
  %v435 = vpop.f32.mrf.mxu0
  %436 = vmatprep.mubr.f32.mxu0 0.0
  %437 = vmatmul.mubr.f32.gmra.mxu0 %v128
  %v438 = vpop.f32.mrf.mxu0
  %v439 = vadd.f32 0.0, %v438
  %v440 = vpop.f32.mrf.mxu0
  %441 = vmatprep.mubr.f32.mxu0 0.0
  %442 = vmatmul.mubr.f32.gmra.mxu0 %v131
  %v443 = vpop.f32.mrf.mxu0
  %v444 = vadd.f32 0.0, %v443
  %v445 = vpop.f32.mrf.mxu0
  %446 = vmatprep.mubr.f32.mxu0 0.0
  %447 = vmatmul.mubr.f32.gmra.mxu0 %v134
  %v448 = vpop.f32.mrf.mxu0
  %v449 = vadd.f32 0.0, %v448
  %v450 = vpop.f32.mrf.mxu0
  %451 = vmatprep.mubr.f32.mxu0 0.0
  %452 = vmatmul.mubr.f32.gmra.mxu0 %v137
  %v453 = vpop.f32.mrf.mxu0
  %v454 = vadd.f32 0.0, %v453
  %v455 = vpop.f32.mrf.mxu0
  %456 = vmatprep.mubr.f32.mxu0 0.0
  %457 = vmatmul.mubr.f32.gmra.mxu0 %v140
  %v458 = vpop.f32.mrf.mxu0
  %v459 = vadd.f32 0.0, %v458
  %v460 = vpop.f32.mrf.mxu0
  %461 = vmatprep.mubr.f32.mxu0 0.0
  %462 = vmatmul.mubr.f32.gmra.mxu0 %v143
  %v463 = vpop.f32.mrf.mxu0
  %v464 = vadd.f32 0.0, %v463
  %v465 = vpop.f32.mrf.mxu0
  %466 = vmatprep.mubr.f32.mxu0 0.0
  %467 = vmatmul.mubr.f32.gmra.mxu0 %v146
  %v468 = vpop.f32.mrf.mxu0
  %v469 = vadd.f32 0.0, %v468
  %v470 = vpop.f32.mrf.mxu0
  %471 = vmatprep.mubr.f32.mxu0 0.0
  %472 = vmatmul.mubr.f32.gmra.mxu0 %v149
  %v473 = vpop.f32.mrf.mxu0
  %v474 = vadd.f32 0.0, %v473
  %v475 = vpop.f32.mrf.mxu0
  %476 = vmatprep.mubr.f32.mxu0 0.0
  %477 = vmatmul.mubr.f32.gmra.mxu0 %v152
  %v478 = vpop.f32.mrf.mxu0
  %v479 = vadd.f32 0.0, %v478
  %v480 = vpop.f32.mrf.mxu0
  %481 = vmatprep.mubr.f32.mxu0 0.0
  %482 = vmatmul.mubr.f32.gmra.mxu0 %v155
  %v483 = vpop.f32.mrf.mxu0
  %v484 = vadd.f32 0.0, %v483
  %v485 = vpop.f32.mrf.mxu0
  %486 = vmatprep.mubr.f32.mxu0 0.0
  %487 = vmatmul.mubr.f32.gmra.mxu0 %v158
  %v488 = vpop.f32.mrf.mxu0
  %v489 = vadd.f32 0.0, %v488
  %v490 = vpop.f32.mrf.mxu0
  %491 = vmatprep.mubr.f32.mxu0 0.0
  %492 = vmatmul.mubr.f32.gmra.mxu0 %v161
  %v493 = vpop.f32.mrf.mxu0
  %v494 = vadd.f32 0.0, %v493
  %v495 = vpop.f32.mrf.mxu0
  %496 = vmatprep.mubr.f32.mxu0 0.0
  %497 = vmatmul.mubr.f32.gmra.mxu0 %v164
  %v498 = vpop.f32.mrf.mxu0
  %v499 = vadd.f32 0.0, %v498
  %v500 = vpop.f32.mrf.mxu0
  %501 = vmatprep.mubr.f32.mxu0 0.0
  %502 = vmatmul.mubr.f32.gmra.mxu0 %v167
  %v503 = vpop.f32.mrf.mxu0
  %v504 = vadd.f32 0.0, %v503
  %v505 = vpop.f32.mrf.mxu0
  %506 = vmatprep.mubr.f32.mxu0 0.0
  %507 = vmatmul.mubr.f32.gmra.mxu0 %v170
  %v508 = vpop.f32.mrf.mxu0
  %v509 = vadd.f32 0.0, %v508
  %v510 = vpop.f32.mrf.mxu0
  %511 = vmatprep.mubr.f32.mxu0 0.0
  %512 = vmatmul.mubr.f32.gmra.mxu0 %v173
  %v513 = vpop.f32.mrf.mxu0
  %v514 = vadd.f32 0.0, %v513
  %v515 = vpop.f32.mrf.mxu0
  %516 = vmatprep.mubr.f32.mxu0 0.0
  %517 = vmatmul.mubr.f32.gmra.mxu0 %v176
  %v518 = vpop.f32.mrf.mxu0
  %v519 = vadd.f32 0.0, %v518
  %v520 = vpop.f32.mrf.mxu0
  %521 = vmatprep.mubr.f32.mxu0 0.0
  %522 = vmatmul.mubr.f32.gmra.mxu0 %v179
  %v523 = vpop.f32.mrf.mxu0
  %v524 = vadd.f32 0.0, %v523
  %v525 = vpop.f32.mrf.mxu0
  %526 = vmatprep.mubr.f32.mxu0 0.0
  %527 = vmatmul.mubr.f32.gmra.mxu0 %v182
  %v528 = vpop.f32.mrf.mxu0
  %v529 = vadd.f32 0.0, %v528
  %v530 = vpop.f32.mrf.mxu0
  %531 = vmatprep.mubr.f32.mxu0 0.0
  %532 = vmatmul.mubr.f32.gmra.mxu0 %v185
  %v533 = vpop.f32.mrf.mxu0
  %v534 = vadd.f32 0.0, %v533
  %v535 = vpop.f32.mrf.mxu0
  %536 = vmatprep.mubr.f32.mxu0 0.0
  %537 = vmatmul.mubr.f32.gmra.mxu0 %v188
  %v538 = vpop.f32.mrf.mxu0
  %v539 = vadd.f32 0.0, %v538
  %v540 = vpop.f32.mrf.mxu0
  %541 = vmatprep.mubr.f32.mxu0 0.0
  %542 = vmatmul.mubr.f32.gmra.mxu0 %v191
  %v543 = vpop.f32.mrf.mxu0
  %v544 = vadd.f32 0.0, %v543
  %v545 = vpop.f32.mrf.mxu0
  %546 = vmatprep.mubr.f32.mxu0 0.0
  %547 = vmatmul.mubr.f32.gmra.mxu0 %v194
  %v548 = vpop.f32.mrf.mxu0
  %v549 = vadd.f32 0.0, %v548
  %v550 = vpop.f32.mrf.mxu0
  %551 = vmatprep.mubr.f32.mxu0 0.0
  %552 = vmatmul.mubr.f32.gmra.mxu0 %v197
  %v553 = vpop.f32.mrf.mxu0
  %v554 = vadd.f32 0.0, %v553
  %v555 = vpop.f32.mrf.mxu0
  %556 = vmatprep.mubr.f32.mxu0 0.0
  %557 = vmatmul.mubr.f32.gmra.mxu0 %v200
  %v558 = vpop.f32.mrf.mxu0
  %v559 = vadd.f32 0.0, %v558
  %v560 = vpop.f32.mrf.mxu0
  %561 = vmatprep.mubr.f32.mxu0 0.0
  %562 = vmatmul.mubr.f32.gmra.mxu0 %v203
  %v563 = vpop.f32.mrf.mxu0
  %v564 = vadd.f32 0.0, %v563
  %v565 = vpop.f32.mrf.mxu0
  %566 = vmatprep.mubr.f32.mxu0 0.0
  %567 = vmatmul.mubr.f32.gmra.mxu0 %v206
  %v568 = vpop.f32.mrf.mxu0
  %v569 = vadd.f32 0.0, %v568
  %v570 = vpop.f32.mrf.mxu0
  %571 = vmatprep.mubr.f32.mxu0 0.0
  %572 = vmatmul.mubr.f32.gmra.mxu0 %v209
  %v573 = vpop.f32.mrf.mxu0
  %v574 = vadd.f32 0.0, %v573
  %v575 = vpop.f32.mrf.mxu0
  %576 = vmatprep.mubr.f32.mxu0 0.0
  %577 = vmatmul.mubr.f32.gmra.mxu0 %v212
  %v578 = vpop.f32.mrf.mxu0
  %v579 = vadd.f32 0.0, %v578
  %v580 = vpop.f32.mrf.mxu0
  %581 = vmatprep.mubr.f32.mxu0 0.0
  %582 = vmatmul.mubr.f32.gmra.mxu0 %v215
  %v583 = vpop.f32.mrf.mxu0
  %v584 = vadd.f32 0.0, %v583
  %v585 = vpop.f32.mrf.mxu0
  %586 = vmatprep.mubr.f32.mxu0 0.0
  %587 = vmatmul.mubr.f32.gmra.mxu0 %v218
  %v588 = vpop.f32.mrf.mxu0
  %v589 = vadd.f32 0.0, %v588
  %v590 = vpop.f32.mrf.mxu0
  %591 = vmatprep.mubr.f32.mxu0 0.0
  %592 = vmatmul.mubr.f32.gmra.mxu0 %v221
  %v593 = vpop.f32.mrf.mxu0
  %v594 = vadd.f32 0.0, %v593
  %v595 = vpop.f32.mrf.mxu0
  %596 = vmatprep.mubr.f32.mxu0 0.0
  %597 = vmatmul.mubr.f32.gmra.mxu0 %v224
  %v598 = vpop.f32.mrf.mxu0
  %v599 = vadd.f32 0.0, %v598
  %v600 = vpop.f32.mrf.mxu0
  %601 = vmatprep.mubr.f32.mxu0 0.0
  %602 = vmatmul.mubr.f32.gmra.mxu0 %v227
  %v603 = vpop.f32.mrf.mxu0
  %v604 = vadd.f32 0.0, %v603
  %v605 = vpop.f32.mrf.mxu0
  %606 = vmatprep.mubr.f32.mxu0 0.0
  %607 = vmatmul.mubr.f32.gmra.mxu0 %v230
  %v608 = vpop.f32.mrf.mxu0
  %v609 = vadd.f32 0.0, %v608
  %v610 = vpop.f32.mrf.mxu0
  %611 = vmatprep.mubr.f32.mxu0 0.0
  %612 = vmatmul.mubr.f32.gmra.mxu0 %v233
  %v613 = vpop.f32.mrf.mxu0
  %v614 = vadd.f32 0.0, %v613
  %v615 = vpop.f32.mrf.mxu0
  %616 = vmatprep.mubr.f32.mxu0 0.0
  %617 = vmatmul.mubr.f32.gmra.mxu0 %v236
  %v618 = vpop.f32.mrf.mxu0
  %v619 = vadd.f32 0.0, %v618
  %v620 = vpop.f32.mrf.mxu0
  %621 = vmatprep.mubr.f32.mxu0 0.0
  %622 = vmatmul.mubr.f32.gmra.mxu0 %v239
  %v623 = vpop.f32.mrf.mxu0
  %v624 = vadd.f32 0.0, %v623
  %v625 = vpop.f32.mrf.mxu0
  %626 = vmatprep.mubr.f32.mxu0 0.0
  %627 = vmatmul.mubr.f32.gmra.mxu0 %v242
  %v628 = vpop.f32.mrf.mxu0
  %v629 = vadd.f32 0.0, %v628
  %v630 = vpop.f32.mrf.mxu0
  %631 = vmatprep.mubr.f32.mxu0 0.0
  %632 = vmatmul.mubr.f32.gmra.mxu0 %v245
  %v633 = vpop.f32.mrf.mxu0
  %v634 = vadd.f32 0.0, %v633
  %v635 = vpop.f32.mrf.mxu0
  %636 = vmatprep.mubr.f32.mxu0 0.0
  %637 = vmatmul.mubr.f32.gmra.mxu0 %v248
  %v638 = vpop.f32.mrf.mxu0
  %v639 = vadd.f32 0.0, %v638
  %v640 = vpop.f32.mrf.mxu0
  %641 = vmatprep.mubr.f32.mxu0 0.0
  %642 = vmatmul.mubr.f32.gmra.mxu0 %v251
  %v643 = vpop.f32.mrf.mxu0
  %v644 = vadd.f32 0.0, %v643
  %v645 = vpop.f32.mrf.mxu0
  %646 = vmatprep.mubr.f32.mxu0 0.0
  %647 = vmatmul.mubr.f32.gmra.mxu0 %v254
  %v648 = vpop.f32.mrf.mxu0
  %v649 = vadd.f32 0.0, %v648
  %v650 = vpop.f32.mrf.mxu0
  %651 = vmatprep.mubr.f32.mxu0 0.0
  %652 = vmatmul.mubr.f32.gmra.mxu0 %v257
  %v653 = vpop.f32.mrf.mxu0
  %v654 = vadd.f32 0.0, %v653
  %v655 = vpop.f32.mrf.mxu0
  %656 = vmatprep.mubr.f32.mxu0 0.0
  %657 = vmatmul.mubr.f32.gmra.mxu0 %v260
  %v658 = vpop.f32.mrf.mxu0
  %v659 = vadd.f32 0.0, %v658
  %v660 = vpop.f32.mrf.mxu0
  %661 = vmatprep.mubr.f32.mxu0 0.0
  %662 = vmatmul.mubr.f32.gmra.mxu0 %v263
  %v663 = vpop.f32.mrf.mxu0
  %v664 = vadd.f32 0.0, %v663
  %v665 = vpop.f32.mrf.mxu0
  %666 = vmatprep.mubr.f32.mxu0 0.0
  %667 = vmatmul.mubr.f32.gmra.mxu0 %v266
  %v668 = vpop.f32.mrf.mxu0
  %v669 = vadd.f32 0.0, %v668
  %v670 = vpop.f32.mrf.mxu0
  %671 = vmatprep.mubr.f32.mxu0 0.0
  %672 = vmatmul.mubr.f32.gmra.mxu0 %v269
  %v673 = vpop.f32.mrf.mxu0
  %v674 = vadd.f32 0.0, %v673
  %v675 = vpop.f32.mrf.mxu0
  %676 = vmatprep.mubr.f32.mxu0 0.0
  %677 = vmatmul.mubr.f32.gmra.mxu0 %v272
  %v678 = vpop.f32.mrf.mxu0
  %v679 = vadd.f32 0.0, %v678
  %v680 = vpop.f32.mrf.mxu0
  %681 = vmatprep.mubr.f32.mxu0 0.0
  %682 = vmatmul.mubr.f32.gmra.mxu0 %v275
  %v683 = vpop.f32.mrf.mxu0
  %v684 = vadd.f32 0.0, %v683
  %v685 = vpop.f32.mrf.mxu0
  %686 = vmatprep.mubr.f32.mxu0 0.0
  %687 = vmatmul.mubr.f32.gmra.mxu0 %v278
  %v688 = vpop.f32.mrf.mxu0
  %v689 = vadd.f32 0.0, %v688
  %v690 = vpop.f32.mrf.mxu0
  %691 = vmatprep.mubr.f32.mxu0 0.0
  %692 = vmatmul.mubr.f32.gmra.mxu0 %v281
  %v693 = vpop.f32.mrf.mxu0
  %v694 = vadd.f32 0.0, %v693
  %v695 = vpop.f32.mrf.mxu0
  %696 = vmatprep.mubr.f32.mxu0 0.0
  %697 = vmatmul.mubr.f32.gmra.mxu0 %v284
  %v698 = vpop.f32.mrf.mxu0
  %v699 = vadd.f32 0.0, %v698
  %v700 = vpop.f32.mrf.mxu0
  %701 = vmatprep.mubr.f32.mxu0 0.0
  %702 = vmatmul.mubr.f32.gmra.mxu0 %v287
  %v703 = vpop.f32.mrf.mxu0
  %v704 = vadd.f32 0.0, %v703
  %v705 = vpop.f32.mrf.mxu0
  %706 = vmatprep.mubr.f32.mxu0 0.0
  %707 = vmatmul.mubr.f32.gmra.mxu0 %v290
  %v708 = vpop.f32.mrf.mxu0
  %v709 = vadd.f32 0.0, %v708
  %v710 = vpop.f32.mrf.mxu0
  %711 = vmatprep.mubr.f32.mxu0 0.0
  %712 = vmatmul.mubr.f32.gmra.mxu0 %v293
  %v713 = vpop.f32.mrf.mxu0
  %v714 = vadd.f32 0.0, %v713
  %v715 = vpop.f32.mrf.mxu0
  %716 = vmatprep.mubr.f32.mxu0 0.0
  %717 = vmatmul.mubr.f32.gmra.mxu0 %v296
  %v718 = vpop.f32.mrf.mxu0
  %v719 = vadd.f32 0.0, %v718
  %v720 = vpop.f32.mrf.mxu0
  %721 = vmatprep.mubr.f32.mxu0 0.0
  %722 = vmatmul.mubr.f32.gmra.mxu0 %v299
  %v723 = vpop.f32.mrf.mxu0
  %v724 = vadd.f32 0.0, %v723
  %v725 = vpop.f32.mrf.mxu0
  %726 = vmatprep.mubr.f32.mxu0 0.0
  %727 = vmatmul.mubr.f32.gmra.mxu0 %v302
  %v728 = vpop.f32.mrf.mxu0
  %v729 = vadd.f32 0.0, %v728
  %v730 = vpop.f32.mrf.mxu0
  %731 = vmatprep.mubr.f32.mxu0 0.0
  %732 = vmatmul.mubr.f32.gmra.mxu0 %v305
  %v733 = vpop.f32.mrf.mxu0
  %v734 = vadd.f32 0.0, %v733
  %v735 = vpop.f32.mrf.mxu0
  %736 = vmatprep.mubr.f32.mxu0 0.0
  %737 = vmatmul.mubr.f32.gmra.mxu0 %v308
  %v738 = vpop.f32.mrf.mxu0
  %v739 = vadd.f32 0.0, %v738
  %v740 = vpop.f32.mrf.mxu0
  %741 = vmatprep.mubr.f32.mxu0 0.0
  %742 = vmatmul.mubr.f32.gmra.mxu0 %v311
  %v743 = vpop.f32.mrf.mxu0
  %v744 = vadd.f32 0.0, %v743
  %v745 = vpop.f32.mrf.mxu0
  %746 = vmatprep.mubr.f32.mxu0 0.0
  %747 = vmatmul.mubr.f32.gmra.mxu0 %v314
  %v748 = vpop.f32.mrf.mxu0
  %v749 = vadd.f32 0.0, %v748
  %v750 = vpop.f32.mrf.mxu0
  %751 = vmatprep.mubr.f32.mxu0 0.0
  %752 = vmatmul.mubr.f32.gmra.mxu0 %v317
  %v753 = vpop.f32.mrf.mxu0
  %v754 = vadd.f32 0.0, %v753
  %v755 = vpop.f32.mrf.mxu0
  %756 = vmatprep.mubr.f32.mxu0 0.0
  %757 = vmatmul.mubr.f32.gmra.mxu0 %v320
  %v758 = vpop.f32.mrf.mxu0
  %v759 = vadd.f32 0.0, %v758
  %v760 = vpop.f32.mrf.mxu0
  %761 = vmatprep.mubr.f32.mxu0 0.0
  %762 = vmatmul.mubr.f32.gmra.mxu0 %v323
  %v763 = vpop.f32.mrf.mxu0
  %v764 = vadd.f32 0.0, %v763
  %v765 = vpop.f32.mrf.mxu0
  %766 = vmatprep.mubr.f32.mxu0 0.0
  %767 = vmatmul.mubr.f32.gmra.mxu0 %v326
  %v768 = vpop.f32.mrf.mxu0
  %v769 = vadd.f32 0.0, %v768
  %v770 = vpop.f32.mrf.mxu0
  %771 = vdwg.mxu0
  %v772 = vld [vmem:[%s2] sm:$0xff]
  %v773 = vld [vmem:[%s2 + $0x8] sm:$0xff]
  %v774 = vld [vmem:[%s2 + $0x10] sm:$0xff]
  %v775 = vld [vmem:[%s2 + $0x18] sm:$0xff]
  %v776 = vld [vmem:[%s2 + $0x20] sm:$0xff]
  %v777 = vld [vmem:[%s2 + $0x28] sm:$0xff]
  %v778 = vld [vmem:[%s2 + $0x30] sm:$0xff]
  %v779 = vld [vmem:[%s2 + $0x38] sm:$0xff]
  %v780 = vld [vmem:[%s2 + $0x40] sm:$0xff]
  %v781 = vld [vmem:[%s2 + $0x48] sm:$0xff]
  %v782 = vld [vmem:[%s2 + $0x50] sm:$0xff]
  %v783 = vld [vmem:[%s2 + $0x58] sm:$0xff]
  %v784 = vld [vmem:[%s2 + $0x60] sm:$0xff]
  %v785 = vld [vmem:[%s2 + $0x68] sm:$0xff]
  %v786 = vld [vmem:[%s2 + $0x70] sm:$0xff]
  %v787 = vld [vmem:[%s2 + $0x78] sm:$0xff]
  %v788 = vld [vmem:[%s2 + $0x80] sm:$0xff]
  %v789 = vld [vmem:[%s2 + $0x88] sm:$0xff]
  %v790 = vld [vmem:[%s2 + $0x90] sm:$0xff]
  %v791 = vld [vmem:[%s2 + $0x98] sm:$0xff]
  %v792 = vld [vmem:[%s2 + $0xa0] sm:$0xff]
  %v793 = vld [vmem:[%s2 + $0xa8] sm:$0xff]
  %v794 = vld [vmem:[%s2 + $0xb0] sm:$0xff]
  %v795 = vld [vmem:[%s2 + $0xb8] sm:$0xff]
  %v796 = vld [vmem:[%s2 + $0xc0] sm:$0xff]
  %v797 = vld [vmem:[%s2 + $0xc8] sm:$0xff]
  %v798 = vld [vmem:[%s2 + $0xd0] sm:$0xff]
  %v799 = vld [vmem:[%s2 + $0xd8] sm:$0xff]
  %v800 = vld [vmem:[%s2 + $0xe0] sm:$0xff]
  %v801 = vld [vmem:[%s2 + $0xe8] sm:$0xff]
  %v802 = vld [vmem:[%s2 + $0xf0] sm:$0xff]
  %v803 = vld [vmem:[%s2 + $0xf8] sm:$0xff]
  %v804 = vld [vmem:[%s2 + $0x100] sm:$0xff]
  %v805 = vld [vmem:[%s2 + $0x108] sm:$0xff]
  %v806 = vld [vmem:[%s2 + $0x110] sm:$0xff]
  %v807 = vld [vmem:[%s2 + $0x118] sm:$0xff]
  %v808 = vld [vmem:[%s2 + $0x120] sm:$0xff]
  %v809 = vld [vmem:[%s2 + $0x128] sm:$0xff]
  %v810 = vld [vmem:[%s2 + $0x130] sm:$0xff]
  %v811 = vld [vmem:[%s2 + $0x138] sm:$0xff]
  %v812 = vld [vmem:[%s2 + $0x140] sm:$0xff]
  %v813 = vld [vmem:[%s2 + $0x148] sm:$0xff]
  %v814 = vld [vmem:[%s2 + $0x150] sm:$0xff]
  %v815 = vld [vmem:[%s2 + $0x158] sm:$0xff]
  %v816 = vld [vmem:[%s2 + $0x160] sm:$0xff]
  %v817 = vld [vmem:[%s2 + $0x168] sm:$0xff]
  %v818 = vld [vmem:[%s2 + $0x170] sm:$0xff]
  %v819 = vld [vmem:[%s2 + $0x178] sm:$0xff]
  %v820 = vld [vmem:[%s2 + $0x180] sm:$0xff]
  %v821 = vld [vmem:[%s2 + $0x188] sm:$0xff]
  %v822 = vld [vmem:[%s2 + $0x190] sm:$0xff]
  %v823 = vld [vmem:[%s2 + $0x198] sm:$0xff]
  %v824 = vld [vmem:[%s2 + $0x1a0] sm:$0xff]
  %v825 = vld [vmem:[%s2 + $0x1a8] sm:$0xff]
  %v826 = vld [vmem:[%s2 + $0x1b0] sm:$0xff]
  %v827 = vld [vmem:[%s2 + $0x1b8] sm:$0xff]
  %v828 = vld [vmem:[%s2 + $0x1c0] sm:$0xff]
  %v829 = vld [vmem:[%s2 + $0x1c8] sm:$0xff]
  %v830 = vld [vmem:[%s2 + $0x1d0] sm:$0xff]
  %v831 = vld [vmem:[%s2 + $0x1d8] sm:$0xff]
  %v832 = vld [vmem:[%s2 + $0x1e0] sm:$0xff]
  %v833 = vld [vmem:[%s2 + $0x1e8] sm:$0xff]
  %v834 = vld [vmem:[%s2 + $0x1f0] sm:$0xff]
  %v835 = vld [vmem:[%s2 + $0x1f8] sm:$0xff]
  %v836 = vld [vmem:[%s2 + $0x200] sm:$0xff]
  %v837 = vld [vmem:[%s2 + $0x208] sm:$0xff]
  %v838 = vld [vmem:[%s2 + $0x210] sm:$0xff]
  %v839 = vld [vmem:[%s2 + $0x218] sm:$0xff]
  %v840 = vld [vmem:[%s2 + $0x220] sm:$0xff]
  %v841 = vld [vmem:[%s2 + $0x228] sm:$0xff]
  %v842 = vld [vmem:[%s2 + $0x230] sm:$0xff]
  %v843 = vld [vmem:[%s2 + $0x238] sm:$0xff]
  %v844 = vld [vmem:[%s2 + $0x240] sm:$0xff]
  %v845 = vld [vmem:[%s2 + $0x248] sm:$0xff]
  %v846 = vld [vmem:[%s2 + $0x250] sm:$0xff]
  %v848 = vsel %vm102, %v772, 0
  %v851 = vsel %vm102, %v773, 0
  %v854 = vsel %vm102, %v774, 0
  %v857 = vsel %vm102, %v775, 0
  %v860 = vsel %vm102, %v776, 0
  %v863 = vsel %vm102, %v777, 0
  %v866 = vsel %vm102, %v778, 0
  %v869 = vsel %vm102, %v779, 0
  %v872 = vsel %vm102, %v780, 0
  %v875 = vsel %vm102, %v781, 0
  %v878 = vsel %vm102, %v782, 0
  %v881 = vsel %vm102, %v783, 0
  %v884 = vsel %vm102, %v784, 0
  %v887 = vsel %vm102, %v785, 0
  %v890 = vsel %vm102, %v786, 0
  %v893 = vsel %vm102, %v787, 0
  %v896 = vsel %vm102, %v788, 0
  %v899 = vsel %vm102, %v789, 0
  %v902 = vsel %vm102, %v790, 0
  %v905 = vsel %vm102, %v791, 0
  %v908 = vsel %vm102, %v792, 0
  %v911 = vsel %vm102, %v793, 0
  %v914 = vsel %vm102, %v794, 0
  %v917 = vsel %vm102, %v795, 0
  %v920 = vsel %vm102, %v796, 0
  %v923 = vsel %vm102, %v797, 0
  %v926 = vsel %vm102, %v798, 0
  %v929 = vsel %vm102, %v799, 0
  %v932 = vsel %vm102, %v800, 0
  %v935 = vsel %vm102, %v801, 0
  %v938 = vsel %vm102, %v802, 0
  %v941 = vsel %vm102, %v803, 0
  %v944 = vsel %vm102, %v804, 0
  %v947 = vsel %vm102, %v805, 0
  %v950 = vsel %vm102, %v806, 0
  %v953 = vsel %vm102, %v807, 0
  %v956 = vsel %vm102, %v808, 0
  %v959 = vsel %vm102, %v809, 0
  %v962 = vsel %vm102, %v810, 0
  %v965 = vsel %vm102, %v811, 0
  %v968 = vsel %vm102, %v812, 0
  %v971 = vsel %vm102, %v813, 0
  %v974 = vsel %vm102, %v814, 0
  %v977 = vsel %vm102, %v815, 0
  %v980 = vsel %vm102, %v816, 0
  %v983 = vsel %vm102, %v817, 0
  %v986 = vsel %vm102, %v818, 0
  %v989 = vsel %vm102, %v819, 0
  %v992 = vsel %vm102, %v820, 0
  %v995 = vsel %vm102, %v821, 0
  %v998 = vsel %vm102, %v822, 0
  %v1001 = vsel %vm102, %v823, 0
  %v1004 = vsel %vm102, %v824, 0
  %v1007 = vsel %vm102, %v825, 0
  %v1010 = vsel %vm102, %v826, 0
  %v1013 = vsel %vm102, %v827, 0
  %v1016 = vsel %vm102, %v828, 0
  %v1019 = vsel %vm102, %v829, 0
  %v1022 = vsel %vm102, %v830, 0
  %v1025 = vsel %vm102, %v831, 0
  %v1028 = vsel %vm102, %v832, 0
  %v1031 = vsel %vm102, %v833, 0
  %v1034 = vsel %vm102, %v834, 0
  %v1037 = vsel %vm102, %v835, 0
  %v1040 = vsel %vm102, %v836, 0
  %v1043 = vsel %vm102, %v837, 0
  %v1046 = vsel %vm102, %v838, 0
  %v1049 = vsel %vm102, %v839, 0
  %v1052 = vsel %vm102, %v840, 0
  %v1055 = vsel %vm102, %v841, 0
  %v1058 = vsel %vm102, %v842, 0
  %v1061 = vsel %vm102, %v843, 0
  %v1064 = vsel %vm102, %v844, 0
  %v1067 = vsel %vm102, %v845, 0
  %v1070 = vsel %vm102, %v846, 0
  %1072 = vmatprep.subr.mxu0 0.0
  %1073 = vmatpush1.msra.mxu0 0.0
  %1074 = vmatprep.subr.mxu0 0.0
  %1075 = vmatpush1.msra.mxu0 0.0
  %1076 = vmatprep.subr.mxu0 0.0
  %1077 = vmatpush1.msra.mxu0 0.0
  %1078 = vmatprep.subr.mxu0 0.0
  %1079 = vmatpush1.msra.mxu0 0.0
  %1080 = vmatprep.subr.mxu0 0.0
  %1081 = vmatpush1.msra.mxu0 0.0
  %1082 = vmatprep.subr.mxu0 0.0
  %1083 = vmatpush1.msra.mxu0 0.0
  %1084 = vmatprep.subr.mxu0 0.0
  %1085 = vmatpush1.msra.mxu0 0.0
  %1086 = vmatprep.subr.mxu0 0.0
  %1087 = vmatpush1.msra.mxu0 0.0
  %1088 = vmatprep.subr.mxu0 0.0
  %1089 = vmatpush1.msra.mxu0 0.0
  %1090 = vmatprep.subr.mxu0 0.0
  %1091 = vmatpush1.msra.mxu0 %v330
  %1092 = vmatprep.subr.mxu0 0.0
  %1093 = vmatpush1.msra.mxu0 %v25
  %1094 = vmatprep.subr.mxu0 0.0
  %1095 = vmatpush1.msra.mxu0 %v24
  %1096 = vmatprep.subr.mxu0 0.0
  %1097 = vmatpush1.msra.mxu0 %v23
  %1098 = vmatprep.subr.mxu0 0.0
  %1099 = vmatpush1.msra.mxu0 %v22
  %1100 = vmatprep.subr.mxu0 0.0
  %1101 = vmatpush1.msra.mxu0 %v21
  %1102 = vmatprep.subr.mxu0 0.0
  %1103 = vmatpush1.msra.mxu0 %v20
  %1104 = vmatprep.subr.mxu0 0.0
  %1105 = vmatpush2.msra.mxu0 0.0
  %1106 = vmatprep.subr.mxu0 0.0
  %1107 = vmatpush2.msra.mxu0 0.0
  %1108 = vmatprep.subr.mxu0 0.0
  %1109 = vmatpush2.msra.mxu0 0.0
  %1110 = vmatprep.subr.mxu0 0.0
  %1111 = vmatpush2.msra.mxu0 0.0
  %1112 = vmatprep.subr.mxu0 0.0
  %1113 = vmatpush2.msra.mxu0 0.0
  %1114 = vmatprep.subr.mxu0 0.0
  %1115 = vmatpush2.msra.mxu0 0.0
  %1116 = vmatprep.subr.mxu0 0.0
  %1117 = vmatpush2.msra.mxu0 0.0
  %1118 = vmatprep.subr.mxu0 0.0
  %1119 = vmatpush2.msra.mxu0 0.0
  %1120 = vmatprep.subr.mxu0 0.0
  %1121 = vmatpush2.msra.mxu0 0.0
  %1122 = vmatprep.subr.mxu0 0.0
  %1123 = vmatpush2.msra.mxu0 0.0
  %1124 = vmatprep.subr.mxu0 0.0
  %1125 = vmatpush2.msra.mxu0 0.0
  %1126 = vmatprep.subr.mxu0 0.0
  %1127 = vmatpush2.msra.mxu0 0.0
  %1128 = vmatprep.subr.mxu0 0.0
  %1129 = vmatpush2.msra.mxu0 0.0
  %1130 = vmatprep.subr.mxu0 0.0
  %1131 = vmatpush2.msra.mxu0 0.0
  %1132 = vmatprep.subr.mxu0 0.0
  %1133 = vmatpush2.msra.mxu0 0.0
  %1134 = vmatprep.subr.mxu0 0.0
  %1135 = vmatpush2.msra.mxu0 0.0
  %1136 = vmatprep.mubr.f32.mxu0 0.0
  %1137 = vmatmul.mubr.f32.gmra.mxu0 %v848
  %v1138 = vpop.f32.mrf.mxu0
  %v1139 = vadd.f32 0.0, %v1138
  %v1140 = vpop.f32.mrf.mxu0
  %1141 = vmatprep.mubr.f32.mxu0 0.0
  %1142 = vmatmul.mubr.f32.gmra.mxu0 %v851
  %v1143 = vpop.f32.mrf.mxu0
  %v1144 = vadd.f32 0.0, %v1143
  %v1145 = vpop.f32.mrf.mxu0
  %1146 = vmatprep.mubr.f32.mxu0 0.0
  %1147 = vmatmul.mubr.f32.gmra.mxu0 %v854
  %v1148 = vpop.f32.mrf.mxu0
  %v1149 = vadd.f32 0.0, %v1148
  %v1150 = vpop.f32.mrf.mxu0
  %1151 = vmatprep.mubr.f32.mxu0 0.0
  %1152 = vmatmul.mubr.f32.gmra.mxu0 %v857
  %v1153 = vpop.f32.mrf.mxu0
  %v1154 = vadd.f32 0.0, %v1153
  %v1155 = vpop.f32.mrf.mxu0
  %1156 = vmatprep.mubr.f32.mxu0 0.0
  %1157 = vmatmul.mubr.f32.gmra.mxu0 %v860
  %v1158 = vpop.f32.mrf.mxu0
  %v1159 = vadd.f32 0.0, %v1158
  %v1160 = vpop.f32.mrf.mxu0
  %1161 = vmatprep.mubr.f32.mxu0 0.0
  %1162 = vmatmul.mubr.f32.gmra.mxu0 %v863
  %v1163 = vpop.f32.mrf.mxu0
  %v1164 = vadd.f32 0.0, %v1163
  %v1165 = vpop.f32.mrf.mxu0
  %1166 = vmatprep.mubr.f32.mxu0 0.0
  %1167 = vmatmul.mubr.f32.gmra.mxu0 %v866
  %v1168 = vpop.f32.mrf.mxu0
  %v1169 = vadd.f32 0.0, %v1168
  %v1170 = vpop.f32.mrf.mxu0
  %1171 = vmatprep.mubr.f32.mxu0 0.0
  %1172 = vmatmul.mubr.f32.gmra.mxu0 %v869
  %v1173 = vpop.f32.mrf.mxu0
  %v1174 = vadd.f32 0.0, %v1173
  %v1175 = vpop.f32.mrf.mxu0
  %1176 = vmatprep.mubr.f32.mxu0 0.0
  %1177 = vmatmul.mubr.f32.gmra.mxu0 %v872
  %v1178 = vpop.f32.mrf.mxu0
  %v1179 = vadd.f32 0.0, %v1178
  %v1180 = vpop.f32.mrf.mxu0
  %1181 = vmatprep.mubr.f32.mxu0 0.0
  %1182 = vmatmul.mubr.f32.gmra.mxu0 %v875
  %v1183 = vpop.f32.mrf.mxu0
  %v1184 = vadd.f32 0.0, %v1183
  %v1185 = vpop.f32.mrf.mxu0
  %1186 = vmatprep.mubr.f32.mxu0 0.0
  %1187 = vmatmul.mubr.f32.gmra.mxu0 %v878
  %v1188 = vpop.f32.mrf.mxu0
  %v1189 = vadd.f32 0.0, %v1188
  %v1190 = vpop.f32.mrf.mxu0
  %1191 = vmatprep.mubr.f32.mxu0 0.0
  %1192 = vmatmul.mubr.f32.gmra.mxu0 %v881
  %v1193 = vpop.f32.mrf.mxu0
  %v1194 = vadd.f32 0.0, %v1193
  %v1195 = vpop.f32.mrf.mxu0
  %1196 = vmatprep.mubr.f32.mxu0 0.0
  %1197 = vmatmul.mubr.f32.gmra.mxu0 %v884
  %v1198 = vpop.f32.mrf.mxu0
  %v1199 = vadd.f32 0.0, %v1198
  %v1200 = vpop.f32.mrf.mxu0
  %1201 = vmatprep.mubr.f32.mxu0 0.0
  %1202 = vmatmul.mubr.f32.gmra.mxu0 %v887
  %v1203 = vpop.f32.mrf.mxu0
  %v1204 = vadd.f32 0.0, %v1203
  %v1205 = vpop.f32.mrf.mxu0
  %1206 = vmatprep.mubr.f32.mxu0 0.0
  %1207 = vmatmul.mubr.f32.gmra.mxu0 %v890
  %v1208 = vpop.f32.mrf.mxu0
  %v1209 = vadd.f32 0.0, %v1208
  %v1210 = vpop.f32.mrf.mxu0
  %1211 = vmatprep.mubr.f32.mxu0 0.0
  %1212 = vmatmul.mubr.f32.gmra.mxu0 %v893
  %v1213 = vpop.f32.mrf.mxu0
  %v1214 = vadd.f32 0.0, %v1213
  %v1215 = vpop.f32.mrf.mxu0
  %1216 = vmatprep.mubr.f32.mxu0 0.0
  %1217 = vmatmul.mubr.f32.gmra.mxu0 %v896
  %v1218 = vpop.f32.mrf.mxu0
  %v1219 = vadd.f32 0.0, %v1218
  %v1220 = vpop.f32.mrf.mxu0
  %1221 = vmatprep.mubr.f32.mxu0 0.0
  %1222 = vmatmul.mubr.f32.gmra.mxu0 %v899
  %v1223 = vpop.f32.mrf.mxu0
  %v1224 = vadd.f32 0.0, %v1223
  %v1225 = vpop.f32.mrf.mxu0
  %1226 = vmatprep.mubr.f32.mxu0 0.0
  %1227 = vmatmul.mubr.f32.gmra.mxu0 %v902
  %v1228 = vpop.f32.mrf.mxu0
  %v1229 = vadd.f32 0.0, %v1228
  %v1230 = vpop.f32.mrf.mxu0
  %1231 = vmatprep.mubr.f32.mxu0 0.0
  %1232 = vmatmul.mubr.f32.gmra.mxu0 %v905
  %v1233 = vpop.f32.mrf.mxu0
  %v1234 = vadd.f32 0.0, %v1233
  %v1235 = vpop.f32.mrf.mxu0
  %1236 = vmatprep.mubr.f32.mxu0 0.0
  %1237 = vmatmul.mubr.f32.gmra.mxu0 %v908
  %v1238 = vpop.f32.mrf.mxu0
  %v1239 = vadd.f32 0.0, %v1238
  %v1240 = vpop.f32.mrf.mxu0
  %1241 = vmatprep.mubr.f32.mxu0 0.0
  %1242 = vmatmul.mubr.f32.gmra.mxu0 %v911
  %v1243 = vpop.f32.mrf.mxu0
  %v1244 = vadd.f32 0.0, %v1243
  %v1245 = vpop.f32.mrf.mxu0
  %1246 = vmatprep.mubr.f32.mxu0 0.0
  %1247 = vmatmul.mubr.f32.gmra.mxu0 %v914
  %v1248 = vpop.f32.mrf.mxu0
  %v1249 = vadd.f32 0.0, %v1248
  %v1250 = vpop.f32.mrf.mxu0
  %1251 = vmatprep.mubr.f32.mxu0 0.0
  %1252 = vmatmul.mubr.f32.gmra.mxu0 %v917
  %v1253 = vpop.f32.mrf.mxu0
  %v1254 = vadd.f32 0.0, %v1253
  %v1255 = vpop.f32.mrf.mxu0
  %1256 = vmatprep.mubr.f32.mxu0 0.0
  %1257 = vmatmul.mubr.f32.gmra.mxu0 %v920
  %v1258 = vpop.f32.mrf.mxu0
  %v1259 = vadd.f32 0.0, %v1258
  %v1260 = vpop.f32.mrf.mxu0
  %1261 = vmatprep.mubr.f32.mxu0 0.0
  %1262 = vmatmul.mubr.f32.gmra.mxu0 %v923
  %v1263 = vpop.f32.mrf.mxu0
  %v1264 = vadd.f32 0.0, %v1263
  %v1265 = vpop.f32.mrf.mxu0
  %1266 = vmatprep.mubr.f32.mxu0 0.0
  %1267 = vmatmul.mubr.f32.gmra.mxu0 %v926
  %v1268 = vpop.f32.mrf.mxu0
  %v1269 = vadd.f32 0.0, %v1268
  %v1270 = vpop.f32.mrf.mxu0
  %1271 = vmatprep.mubr.f32.mxu0 0.0
  %1272 = vmatmul.mubr.f32.gmra.mxu0 %v929
  %v1273 = vpop.f32.mrf.mxu0
  %v1274 = vadd.f32 0.0, %v1273
  %v1275 = vpop.f32.mrf.mxu0
  %1276 = vmatprep.mubr.f32.mxu0 0.0
  %1277 = vmatmul.mubr.f32.gmra.mxu0 %v932
  %v1278 = vpop.f32.mrf.mxu0
  %v1279 = vadd.f32 0.0, %v1278
  %v1280 = vpop.f32.mrf.mxu0
  %1281 = vmatprep.mubr.f32.mxu0 0.0
  %1282 = vmatmul.mubr.f32.gmra.mxu0 %v935
  %v1283 = vpop.f32.mrf.mxu0
  %v1284 = vadd.f32 0.0, %v1283
  %v1285 = vpop.f32.mrf.mxu0
  %1286 = vmatprep.mubr.f32.mxu0 0.0
  %1287 = vmatmul.mubr.f32.gmra.mxu0 %v938
  %v1288 = vpop.f32.mrf.mxu0
  %v1289 = vadd.f32 0.0, %v1288
  %v1290 = vpop.f32.mrf.mxu0
  %1291 = vmatprep.mubr.f32.mxu0 0.0
  %1292 = vmatmul.mubr.f32.gmra.mxu0 %v941
  %v1293 = vpop.f32.mrf.mxu0
  %v1294 = vadd.f32 0.0, %v1293
  %v1295 = vpop.f32.mrf.mxu0
  %1296 = vmatprep.mubr.f32.mxu0 0.0
  %1297 = vmatmul.mubr.f32.gmra.mxu0 %v944
  %v1298 = vpop.f32.mrf.mxu0
  %v1299 = vadd.f32 0.0, %v1298
  %v1300 = vpop.f32.mrf.mxu0
  %1301 = vmatprep.mubr.f32.mxu0 0.0
  %1302 = vmatmul.mubr.f32.gmra.mxu0 %v947
  %v1303 = vpop.f32.mrf.mxu0
  %v1304 = vadd.f32 0.0, %v1303
  %v1305 = vpop.f32.mrf.mxu0
  %1306 = vmatprep.mubr.f32.mxu0 0.0
  %1307 = vmatmul.mubr.f32.gmra.mxu0 %v950
  %v1308 = vpop.f32.mrf.mxu0
  %v1309 = vadd.f32 0.0, %v1308
  %v1310 = vpop.f32.mrf.mxu0
  %1311 = vmatprep.mubr.f32.mxu0 0.0
  %1312 = vmatmul.mubr.f32.gmra.mxu0 %v953
  %v1313 = vpop.f32.mrf.mxu0
  %v1314 = vadd.f32 0.0, %v1313
  %v1315 = vpop.f32.mrf.mxu0
  %1316 = vmatprep.mubr.f32.mxu0 0.0
  %1317 = vmatmul.mubr.f32.gmra.mxu0 %v956
  %v1318 = vpop.f32.mrf.mxu0
  %v1319 = vadd.f32 0.0, %v1318
  %v1320 = vpop.f32.mrf.mxu0
  %1321 = vmatprep.mubr.f32.mxu0 0.0
  %1322 = vmatmul.mubr.f32.gmra.mxu0 %v959
  %v1323 = vpop.f32.mrf.mxu0
  %v1324 = vadd.f32 0.0, %v1323
  %v1325 = vpop.f32.mrf.mxu0
  %1326 = vmatprep.mubr.f32.mxu0 0.0
  %1327 = vmatmul.mubr.f32.gmra.mxu0 %v962
  %v1328 = vpop.f32.mrf.mxu0
  %v1329 = vadd.f32 0.0, %v1328
  %v1330 = vpop.f32.mrf.mxu0
  %1331 = vmatprep.mubr.f32.mxu0 0.0
  %1332 = vmatmul.mubr.f32.gmra.mxu0 %v965
  %v1333 = vpop.f32.mrf.mxu0
  %v1334 = vadd.f32 0.0, %v1333
  %v1335 = vpop.f32.mrf.mxu0
  %1336 = vmatprep.mubr.f32.mxu0 0.0
  %1337 = vmatmul.mubr.f32.gmra.mxu0 %v968
  %v1338 = vpop.f32.mrf.mxu0
  %v1339 = vadd.f32 0.0, %v1338
  %v1340 = vpop.f32.mrf.mxu0
  %1341 = vmatprep.mubr.f32.mxu0 0.0
  %1342 = vmatmul.mubr.f32.gmra.mxu0 %v971
  %v1343 = vpop.f32.mrf.mxu0
  %v1344 = vadd.f32 0.0, %v1343
  %v1345 = vpop.f32.mrf.mxu0
  %1346 = vmatprep.mubr.f32.mxu0 0.0
  %1347 = vmatmul.mubr.f32.gmra.mxu0 %v974
  %v1348 = vpop.f32.mrf.mxu0
  %v1349 = vadd.f32 0.0, %v1348
  %v1350 = vpop.f32.mrf.mxu0
  %1351 = vmatprep.mubr.f32.mxu0 0.0
  %1352 = vmatmul.mubr.f32.gmra.mxu0 %v977
  %v1353 = vpop.f32.mrf.mxu0
  %v1354 = vadd.f32 0.0, %v1353
  %v1355 = vpop.f32.mrf.mxu0
  %1356 = vmatprep.mubr.f32.mxu0 0.0
  %1357 = vmatmul.mubr.f32.gmra.mxu0 %v980
  %v1358 = vpop.f32.mrf.mxu0
  %v1359 = vadd.f32 0.0, %v1358
  %v1360 = vpop.f32.mrf.mxu0
  %1361 = vmatprep.mubr.f32.mxu0 0.0
  %1362 = vmatmul.mubr.f32.gmra.mxu0 %v983
  %v1363 = vpop.f32.mrf.mxu0
  %v1364 = vadd.f32 0.0, %v1363
  %v1365 = vpop.f32.mrf.mxu0
  %1366 = vmatprep.mubr.f32.mxu0 0.0
  %1367 = vmatmul.mubr.f32.gmra.mxu0 %v986
  %v1368 = vpop.f32.mrf.mxu0
  %v1369 = vadd.f32 0.0, %v1368
  %v1370 = vpop.f32.mrf.mxu0
  %1371 = vmatprep.mubr.f32.mxu0 0.0
  %1372 = vmatmul.mubr.f32.gmra.mxu0 %v989
  %v1373 = vpop.f32.mrf.mxu0
  %v1374 = vadd.f32 0.0, %v1373
  %v1375 = vpop.f32.mrf.mxu0
  %1376 = vmatprep.mubr.f32.mxu0 0.0
  %1377 = vmatmul.mubr.f32.gmra.mxu0 %v992
  %v1378 = vpop.f32.mrf.mxu0
  %v1379 = vadd.f32 0.0, %v1378
  %v1380 = vpop.f32.mrf.mxu0
  %1381 = vmatprep.mubr.f32.mxu0 0.0
  %1382 = vmatmul.mubr.f32.gmra.mxu0 %v995
  %v1383 = vpop.f32.mrf.mxu0
  %v1384 = vadd.f32 0.0, %v1383
  %v1385 = vpop.f32.mrf.mxu0
  %1386 = vmatprep.mubr.f32.mxu0 0.0
  %1387 = vmatmul.mubr.f32.gmra.mxu0 %v998
  %v1388 = vpop.f32.mrf.mxu0
  %v1389 = vadd.f32 0.0, %v1388
  %v1390 = vpop.f32.mrf.mxu0
  %1391 = vmatprep.mubr.f32.mxu0 0.0
  %1392 = vmatmul.mubr.f32.gmra.mxu0 %v1001
  %v1393 = vpop.f32.mrf.mxu0
  %v1394 = vadd.f32 0.0, %v1393
  %v1395 = vpop.f32.mrf.mxu0
  %1396 = vmatprep.mubr.f32.mxu0 0.0
  %1397 = vmatmul.mubr.f32.gmra.mxu0 %v1004
  %v1398 = vpop.f32.mrf.mxu0
  %v1399 = vadd.f32 0.0, %v1398
  %v1400 = vpop.f32.mrf.mxu0
  %1401 = vmatprep.mubr.f32.mxu0 0.0
  %1402 = vmatmul.mubr.f32.gmra.mxu0 %v1007
  %v1403 = vpop.f32.mrf.mxu0
  %v1404 = vadd.f32 0.0, %v1403
  %v1405 = vpop.f32.mrf.mxu0
  %1406 = vmatprep.mubr.f32.mxu0 0.0
  %1407 = vmatmul.mubr.f32.gmra.mxu0 %v1010
  %v1408 = vpop.f32.mrf.mxu0
  %v1409 = vadd.f32 0.0, %v1408
  %v1410 = vpop.f32.mrf.mxu0
  %1411 = vmatprep.mubr.f32.mxu0 0.0
  %1412 = vmatmul.mubr.f32.gmra.mxu0 %v1013
  %v1413 = vpop.f32.mrf.mxu0
  %v1414 = vadd.f32 0.0, %v1413
  %v1415 = vpop.f32.mrf.mxu0
  %1416 = vmatprep.mubr.f32.mxu0 0.0
  %1417 = vmatmul.mubr.f32.gmra.mxu0 %v1016
  %v1418 = vpop.f32.mrf.mxu0
  %v1419 = vadd.f32 0.0, %v1418
  %v1420 = vpop.f32.mrf.mxu0
  %1421 = vmatprep.mubr.f32.mxu0 0.0
  %1422 = vmatmul.mubr.f32.gmra.mxu0 %v1019
  %v1423 = vpop.f32.mrf.mxu0
  %v1424 = vadd.f32 0.0, %v1423
  %v1425 = vpop.f32.mrf.mxu0
  %1426 = vmatprep.mubr.f32.mxu0 0.0
  %1427 = vmatmul.mubr.f32.gmra.mxu0 %v1022
  %v1428 = vpop.f32.mrf.mxu0
  %v1429 = vadd.f32 0.0, %v1428
  %v1430 = vpop.f32.mrf.mxu0
  %1431 = vmatprep.mubr.f32.mxu0 0.0
  %1432 = vmatmul.mubr.f32.gmra.mxu0 %v1025
  %v1433 = vpop.f32.mrf.mxu0
  %v1434 = vadd.f32 0.0, %v1433
  %v1435 = vpop.f32.mrf.mxu0
  %1436 = vmatprep.mubr.f32.mxu0 0.0
  %1437 = vmatmul.mubr.f32.gmra.mxu0 %v1028
  %v1438 = vpop.f32.mrf.mxu0
  %v1439 = vadd.f32 0.0, %v1438
  %v1440 = vpop.f32.mrf.mxu0
  %1441 = vmatprep.mubr.f32.mxu0 0.0
  %1442 = vmatmul.mubr.f32.gmra.mxu0 %v1031
  %v1443 = vpop.f32.mrf.mxu0
  %v1444 = vadd.f32 0.0, %v1443
  %v1445 = vpop.f32.mrf.mxu0
  %1446 = vmatprep.mubr.f32.mxu0 0.0
  %1447 = vmatmul.mubr.f32.gmra.mxu0 %v1034
  %v1448 = vpop.f32.mrf.mxu0
  %v1449 = vadd.f32 0.0, %v1448
  %v1450 = vpop.f32.mrf.mxu0
  %1451 = vmatprep.mubr.f32.mxu0 0.0
  %1452 = vmatmul.mubr.f32.gmra.mxu0 %v1037
  %v1453 = vpop.f32.mrf.mxu0
  %v1454 = vadd.f32 0.0, %v1453
  %v1455 = vpop.f32.mrf.mxu0
  %1456 = vmatprep.mubr.f32.mxu0 0.0
  %1457 = vmatmul.mubr.f32.gmra.mxu0 %v1040
  %v1458 = vpop.f32.mrf.mxu0
  %v1459 = vadd.f32 0.0, %v1458
  %v1460 = vpop.f32.mrf.mxu0
  %1461 = vmatprep.mubr.f32.mxu0 0.0
  %1462 = vmatmul.mubr.f32.gmra.mxu0 %v1043
  %v1463 = vpop.f32.mrf.mxu0
  %v1464 = vadd.f32 0.0, %v1463
  %v1465 = vpop.f32.mrf.mxu0
  %1466 = vmatprep.mubr.f32.mxu0 0.0
  %1467 = vmatmul.mubr.f32.gmra.mxu0 %v1046
  %v1468 = vpop.f32.mrf.mxu0
  %v1469 = vadd.f32 0.0, %v1468
  %v1470 = vpop.f32.mrf.mxu0
  %1471 = vmatprep.mubr.f32.mxu0 0.0
  %1472 = vmatmul.mubr.f32.gmra.mxu0 %v1049
  %v1473 = vpop.f32.mrf.mxu0
  %v1474 = vadd.f32 0.0, %v1473
  %v1475 = vpop.f32.mrf.mxu0
  %1476 = vmatprep.mubr.f32.mxu0 0.0
  %1477 = vmatmul.mubr.f32.gmra.mxu0 %v1052
  %v1478 = vpop.f32.mrf.mxu0
  %v1479 = vadd.f32 0.0, %v1478
  %v1480 = vpop.f32.mrf.mxu0
  %1481 = vmatprep.mubr.f32.mxu0 0.0
  %1482 = vmatmul.mubr.f32.gmra.mxu0 %v1055
  %v1483 = vpop.f32.mrf.mxu0
  %v1484 = vadd.f32 0.0, %v1483
  %v1485 = vpop.f32.mrf.mxu0
  %1486 = vmatprep.mubr.f32.mxu0 0.0
  %1487 = vmatmul.mubr.f32.gmra.mxu0 %v1058
  %v1488 = vpop.f32.mrf.mxu0
  %v1489 = vadd.f32 0.0, %v1488
  %v1490 = vpop.f32.mrf.mxu0
  %1491 = vmatprep.mubr.f32.mxu0 0.0
  %1492 = vmatmul.mubr.f32.gmra.mxu0 %v1061
  %v1493 = vpop.f32.mrf.mxu0
  %v1494 = vadd.f32 0.0, %v1493
  %v1495 = vpop.f32.mrf.mxu0
  %1496 = vmatprep.mubr.f32.mxu0 0.0
  %1497 = vmatmul.mubr.f32.gmra.mxu0 %v1064
  %v1498 = vpop.f32.mrf.mxu0
  %v1499 = vadd.f32 0.0, %v1498
  %v1500 = vpop.f32.mrf.mxu0
  %1501 = vmatprep.mubr.f32.mxu0 0.0
  %1502 = vmatmul.mubr.f32.gmra.mxu0 %v1067
  %v1503 = vpop.f32.mrf.mxu0
  %v1504 = vadd.f32 0.0, %v1503
  %v1505 = vpop.f32.mrf.mxu0
  %1506 = vmatprep.mubr.f32.mxu0 0.0
  %1507 = vmatmul.mubr.f32.gmra.mxu0 %v1070
  %v1508 = vpop.f32.mrf.mxu0
  %v1509 = vadd.f32 0.0, %v1508
  %v1510 = vpop.f32.mrf.mxu0
  %1511 = vdwg.mxu0
  %v1512 = vmul.f32 %v399, %v1139
  %v1513 = vmul.f32 %v404, %v1144
  %v1514 = vmul.f32 %v409, %v1149
  %v1515 = vmul.f32 %v414, %v1154
  %v1516 = vmul.f32 %v419, %v1159
  %v1517 = vmul.f32 %v424, %v1164
  %v1518 = vmul.f32 %v429, %v1169
  %v1519 = vmul.f32 %v434, %v1174
  %v1520 = vmul.f32 %v439, %v1179
  %v1521 = vmul.f32 %v444, %v1184
  %v1522 = vmul.f32 %v449, %v1189
  %v1523 = vmul.f32 %v454, %v1194
  %v1524 = vmul.f32 %v459, %v1199
  %v1525 = vmul.f32 %v464, %v1204
  %v1526 = vmul.f32 %v469, %v1209
  %v1527 = vmul.f32 %v474, %v1214
  %v1528 = vmul.f32 %v479, %v1219
  %v1529 = vmul.f32 %v484, %v1224
  %v1530 = vmul.f32 %v489, %v1229
  %v1531 = vmul.f32 %v494, %v1234
  %v1532 = vmul.f32 %v499, %v1239
  %v1533 = vmul.f32 %v504, %v1244
  %v1534 = vmul.f32 %v509, %v1249
  %v1535 = vmul.f32 %v514, %v1254
  %v1536 = vmul.f32 %v519, %v1259
  %v1537 = vmul.f32 %v524, %v1264
  %v1538 = vmul.f32 %v529, %v1269
  %v1539 = vmul.f32 %v534, %v1274
  %v1540 = vmul.f32 %v539, %v1279
  %v1541 = vmul.f32 %v544, %v1284
  %v1542 = vmul.f32 %v549, %v1289
  %v1543 = vmul.f32 %v554, %v1294
  %v1544 = vmul.f32 %v559, %v1299
  %v1545 = vmul.f32 %v564, %v1304
  %v1546 = vmul.f32 %v569, %v1309
  %v1547 = vmul.f32 %v574, %v1314
  %v1548 = vmul.f32 %v579, %v1319
  %v1549 = vmul.f32 %v584, %v1324
  %v1550 = vmul.f32 %v589, %v1329
  %v1551 = vmul.f32 %v594, %v1334
  %v1552 = vmul.f32 %v599, %v1339
  %v1553 = vmul.f32 %v604, %v1344
  %v1554 = vmul.f32 %v609, %v1349
  %v1555 = vmul.f32 %v614, %v1354
  %v1556 = vmul.f32 %v619, %v1359
  %v1557 = vmul.f32 %v624, %v1364
  %v1558 = vmul.f32 %v629, %v1369
  %v1559 = vmul.f32 %v634, %v1374
  %v1560 = vmul.f32 %v639, %v1379
  %v1561 = vmul.f32 %v644, %v1384
  %v1562 = vmul.f32 %v649, %v1389
  %v1563 = vmul.f32 %v654, %v1394
  %v1564 = vmul.f32 %v659, %v1399
  %v1565 = vmul.f32 %v664, %v1404
  %v1566 = vmul.f32 %v669, %v1409
  %v1567 = vmul.f32 %v674, %v1414
  %v1568 = vmul.f32 %v679, %v1419
  %v1569 = vmul.f32 %v684, %v1424
  %v1570 = vmul.f32 %v689, %v1429
  %v1571 = vmul.f32 %v694, %v1434
  %v1572 = vmul.f32 %v699, %v1439
  %v1573 = vmul.f32 %v704, %v1444
  %v1574 = vmul.f32 %v709, %v1449
  %v1575 = vmul.f32 %v714, %v1454
  %v1576 = vmul.f32 %v719, %v1459
  %v1577 = vmul.f32 %v724, %v1464
  %v1578 = vmul.f32 %v729, %v1469
  %v1579 = vmul.f32 %v734, %v1474
  %v1580 = vmul.f32 %v739, %v1479
  %v1581 = vmul.f32 %v744, %v1484
  %v1582 = vmul.f32 %v749, %v1489
  %v1583 = vmul.f32 %v754, %v1494
  %v1584 = vmul.f32 %v759, %v1499
  %v1585 = vmul.f32 %v764, %v1504
  %v1586 = vmul.f32 %v769, %v1509
  %v1587 = vld [vmem:[%s3] sm:$0xff]
  %v1588 = vld [vmem:[%s3 + $0x8] sm:$0xff]
  %v1589 = vld [vmem:[%s3 + $0x10] sm:$0xff]
  %v1590 = vld [vmem:[%s3 + $0x18] sm:$0xff]
  %v1591 = vld [vmem:[%s3 + $0x20] sm:$0xff]
  %v1592 = vld [vmem:[%s3 + $0x28] sm:$0xff]
  %v1593 = vld [vmem:[%s3 + $0x30] sm:$0xff]
  %v1594 = vld [vmem:[%s3 + $0x38] sm:$0xff]
  %v1595 = vld [vmem:[%s3 + $0x40] sm:$0xff]
  %v1596 = vld [vmem:[%s3 + $0x48] sm:$0xff]
  %v1597 = vld [vmem:[%s3 + $0x50] sm:$0xff]
  %v1598 = vld [vmem:[%s3 + $0x58] sm:$0xff]
  %v1599 = vld [vmem:[%s3 + $0x60] sm:$0xff]
  %v1600 = vld [vmem:[%s3 + $0x68] sm:$0xff]
  %v1601 = vld [vmem:[%s3 + $0x70] sm:$0xff]
  %v1602 = vld [vmem:[%s3 + $0x78] sm:$0xff]
  %v1603 = vld [vmem:[%s3 + $0x80] sm:$0xff]
  %v1604 = vld [vmem:[%s3 + $0x88] sm:$0xff]
  %v1605 = vld [vmem:[%s3 + $0x90] sm:$0xff]
  %v1606 = vld [vmem:[%s3 + $0x98] sm:$0xff]
  %v1607 = vld [vmem:[%s3 + $0xa0] sm:$0xff]
  %v1608 = vld [vmem:[%s3 + $0xa8] sm:$0xff]
  %v1609 = vld [vmem:[%s3 + $0xb0] sm:$0xff]
  %v1610 = vld [vmem:[%s3 + $0xb8] sm:$0xff]
  %v1611 = vld [vmem:[%s3 + $0xc0] sm:$0xff]
  %v1612 = vld [vmem:[%s4] sm:$0xff]
  %v1613 = vld [vmem:[%s4 + $0x8] sm:$0xff]
  %v1614 = vld [vmem:[%s4 + $0x10] sm:$0xff]
  %v1615 = vld [vmem:[%s4 + $0x18] sm:$0xff]
  %v1616 = vld [vmem:[%s4 + $0x20] sm:$0xff]
  %1618 = vset.pattern.permute.xlu0 0
  %1619 = vperm.xlu0 %1618, %v1612
  %v1620 = vpop.permute.xlu0 %1619
  %1623 = vset.pattern.permute.xlu0 0
  %1624 = vperm.xlu0 %1623, %v1613
  %v1625 = vpop.permute.xlu0 %1624
  %1628 = vset.pattern.permute.xlu0 0
  %1629 = vperm.xlu0 %1628, %v1614
  %v1630 = vpop.permute.xlu0 %1629
  %1633 = vset.pattern.permute.xlu0 0
  %1634 = vperm.xlu0 %1633, %v1615
  %v1635 = vpop.permute.xlu0 %1634
  %1638 = vset.pattern.permute.xlu0 0
  %1639 = vperm.xlu0 %1638, %v1616
  %v1640 = vpop.permute.xlu0 %1639
  %vm1642 = vcmask 719872
  %v1644 = vsel %vm1642, %v1591, 0
  %v1647 = vsel %vm1642, %v1596, 0
  %v1650 = vsel %vm1642, %v1601, 0
  %v1653 = vsel %vm1642, %v1606, 0
  %v1656 = vsel %vm1642, %v1611, 0
  %1658 = vmatprep.subr.mxu0 0.0
  %1659 = vmatpush1.msra.mxu0 %v1527
  %1660 = vmatprep.subr.mxu0 0.0
  %1661 = vmatpush1.msra.mxu0 %v1526
  %1662 = vmatprep.subr.mxu0 0.0
  %1663 = vmatpush1.msra.mxu0 %v1525
  %1664 = vmatprep.subr.mxu0 0.0
  %1665 = vmatpush1.msra.mxu0 %v1524
  %1666 = vmatprep.subr.mxu0 0.0
  %1667 = vmatpush1.msra.mxu0 %v1523
  %1668 = vmatprep.subr.mxu0 0.0
  %1669 = vmatpush1.msra.mxu0 %v1522
  %1670 = vmatprep.subr.mxu0 0.0
  %1671 = vmatpush1.msra.mxu0 %v1521
  %1672 = vmatprep.subr.mxu0 0.0
  %1673 = vmatpush1.msra.mxu0 %v1520
  %1674 = vmatprep.subr.mxu0 0.0
  %1675 = vmatpush1.msra.mxu0 %v1519
  %1676 = vmatprep.subr.mxu0 0.0
  %1677 = vmatpush1.msra.mxu0 %v1518
  %1678 = vmatprep.subr.mxu0 0.0
  %1679 = vmatpush1.msra.mxu0 %v1517
  %1680 = vmatprep.subr.mxu0 0.0
  %1681 = vmatpush1.msra.mxu0 %v1516
  %1682 = vmatprep.subr.mxu0 0.0
  %1683 = vmatpush1.msra.mxu0 %v1515
  %1684 = vmatprep.subr.mxu0 0.0
  %1685 = vmatpush1.msra.mxu0 %v1514
  %1686 = vmatprep.subr.mxu0 0.0
  %1687 = vmatpush1.msra.mxu0 %v1513
  %1688 = vmatprep.subr.mxu0 0.0
  %1689 = vmatpush1.msra.mxu0 %v1512
  %1690 = vmatprep.subr.mxu0 0.0
  %1691 = vmatpush2.msra.mxu0 %v1543
  %1692 = vmatprep.subr.mxu0 0.0
  %1693 = vmatpush2.msra.mxu0 %v1542
  %1694 = vmatprep.subr.mxu0 0.0
  %1695 = vmatpush2.msra.mxu0 %v1541
  %1696 = vmatprep.subr.mxu0 0.0
  %1697 = vmatpush2.msra.mxu0 %v1540
  %1698 = vmatprep.subr.mxu0 0.0
  %1699 = vmatpush2.msra.mxu0 %v1539
  %1700 = vmatprep.subr.mxu0 0.0
  %1701 = vmatpush2.msra.mxu0 %v1538
  %1702 = vmatprep.subr.mxu0 0.0
  %1703 = vmatpush2.msra.mxu0 %v1537
  %1704 = vmatprep.subr.mxu0 0.0
  %1705 = vmatpush2.msra.mxu0 %v1536
  %1706 = vmatprep.subr.mxu0 0.0
  %1707 = vmatpush2.msra.mxu0 %v1535
  %1708 = vmatprep.subr.mxu0 0.0
  %1709 = vmatpush2.msra.mxu0 %v1534
  %1710 = vmatprep.subr.mxu0 0.0
  %1711 = vmatpush2.msra.mxu0 %v1533
  %1712 = vmatprep.subr.mxu0 0.0
  %1713 = vmatpush2.msra.mxu0 %v1532
  %1714 = vmatprep.subr.mxu0 0.0
  %1715 = vmatpush2.msra.mxu0 %v1531
  %1716 = vmatprep.subr.mxu0 0.0
  %1717 = vmatpush2.msra.mxu0 %v1530
  %1718 = vmatprep.subr.mxu0 0.0
  %1719 = vmatpush2.msra.mxu0 %v1529
  %1720 = vmatprep.subr.mxu0 0.0
  %1721 = vmatpush2.msra.mxu0 %v1528
  %1722 = vmatprep.mubr.f32.mxu0 %v1588
  %1723 = vmatmul.mubr.f32.gmra.mxu0 %v1587
  %v1724 = vpop.f32.mrf.mxu0
  %v1725 = vadd.f32 %v1620, %v1724
  %v1726 = vpop.f32.mrf.mxu0
  %1727 = vmatprep.mubr.f32.mxu0 %v1593
  %1728 = vmatmul.mubr.f32.gmra.mxu0 %v1592
  %v1729 = vpop.f32.mrf.mxu0
  %v1730 = vadd.f32 %v1625, %v1729
  %v1731 = vpop.f32.mrf.mxu0
  %1732 = vmatprep.mubr.f32.mxu0 %v1598
  %1733 = vmatmul.mubr.f32.gmra.mxu0 %v1597
  %v1734 = vpop.f32.mrf.mxu0
  %v1735 = vadd.f32 %v1630, %v1734
  %v1736 = vpop.f32.mrf.mxu0
  %1737 = vmatprep.mubr.f32.mxu0 %v1603
  %1738 = vmatmul.mubr.f32.gmra.mxu0 %v1602
  %v1739 = vpop.f32.mrf.mxu0
  %v1740 = vadd.f32 %v1635, %v1739
  %v1741 = vpop.f32.mrf.mxu0
  %1742 = vmatprep.mubr.f32.mxu0 %v1608
  %1743 = vmatmul.mubr.f32.gmra.mxu0 %v1607
  %v1744 = vpop.f32.mrf.mxu0
  %v1745 = vadd.f32 %v1640, %v1744
  %v1746 = vpop.f32.mrf.mxu0
  %1747 = vdwg.mxu0
  %1748 = vmatprep.subr.mxu0 0.0
  %1749 = vmatpush1.msra.mxu0 %v1559
  %1750 = vmatprep.subr.mxu0 0.0
  %1751 = vmatpush1.msra.mxu0 %v1558
  %1752 = vmatprep.subr.mxu0 0.0
  %1753 = vmatpush1.msra.mxu0 %v1557
  %1754 = vmatprep.subr.mxu0 0.0
  %1755 = vmatpush1.msra.mxu0 %v1556
  %1756 = vmatprep.subr.mxu0 0.0
  %1757 = vmatpush1.msra.mxu0 %v1555
  %1758 = vmatprep.subr.mxu0 0.0
  %1759 = vmatpush1.msra.mxu0 %v1554
  %1760 = vmatprep.subr.mxu0 0.0
  %1761 = vmatpush1.msra.mxu0 %v1553
  %1762 = vmatprep.subr.mxu0 0.0
  %1763 = vmatpush1.msra.mxu0 %v1552
  %1764 = vmatprep.subr.mxu0 0.0
  %1765 = vmatpush1.msra.mxu0 %v1551
  %1766 = vmatprep.subr.mxu0 0.0
  %1767 = vmatpush1.msra.mxu0 %v1550
  %1768 = vmatprep.subr.mxu0 0.0
  %1769 = vmatpush1.msra.mxu0 %v1549
  %1770 = vmatprep.subr.mxu0 0.0
  %1771 = vmatpush1.msra.mxu0 %v1548
  %1772 = vmatprep.subr.mxu0 0.0
  %1773 = vmatpush1.msra.mxu0 %v1547
  %1774 = vmatprep.subr.mxu0 0.0
  %1775 = vmatpush1.msra.mxu0 %v1546
  %1776 = vmatprep.subr.mxu0 0.0
  %1777 = vmatpush1.msra.mxu0 %v1545
  %1778 = vmatprep.subr.mxu0 0.0
  %1779 = vmatpush1.msra.mxu0 %v1544
  %1780 = vmatprep.subr.mxu0 0.0
  %1781 = vmatpush2.msra.mxu0 %v1575
  %1782 = vmatprep.subr.mxu0 0.0
  %1783 = vmatpush2.msra.mxu0 %v1574
  %1784 = vmatprep.subr.mxu0 0.0
  %1785 = vmatpush2.msra.mxu0 %v1573
  %1786 = vmatprep.subr.mxu0 0.0
  %1787 = vmatpush2.msra.mxu0 %v1572
  %1788 = vmatprep.subr.mxu0 0.0
  %1789 = vmatpush2.msra.mxu0 %v1571
  %1790 = vmatprep.subr.mxu0 0.0
  %1791 = vmatpush2.msra.mxu0 %v1570
  %1792 = vmatprep.subr.mxu0 0.0
  %1793 = vmatpush2.msra.mxu0 %v1569
  %1794 = vmatprep.subr.mxu0 0.0
  %1795 = vmatpush2.msra.mxu0 %v1568
  %1796 = vmatprep.subr.mxu0 0.0
  %1797 = vmatpush2.msra.mxu0 %v1567
  %1798 = vmatprep.subr.mxu0 0.0
  %1799 = vmatpush2.msra.mxu0 %v1566
  %1800 = vmatprep.subr.mxu0 0.0
  %1801 = vmatpush2.msra.mxu0 %v1565
  %1802 = vmatprep.subr.mxu0 0.0
  %1803 = vmatpush2.msra.mxu0 %v1564
  %1804 = vmatprep.subr.mxu0 0.0
  %1805 = vmatpush2.msra.mxu0 %v1563
  %1806 = vmatprep.subr.mxu0 0.0
  %1807 = vmatpush2.msra.mxu0 %v1562
  %1808 = vmatprep.subr.mxu0 0.0
  %1809 = vmatpush2.msra.mxu0 %v1561
  %1810 = vmatprep.subr.mxu0 0.0
  %1811 = vmatpush2.msra.mxu0 %v1560
  %1812 = vmatprep.mubr.f32.mxu0 %v1590
  %1813 = vmatmul.mubr.f32.gmra.mxu0 %v1589
  %v1814 = vpop.f32.mrf.mxu0
  %v1815 = vadd.f32 %v1725, %v1814
  %v1816 = vpop.f32.mrf.mxu0
  %1817 = vmatprep.mubr.f32.mxu0 %v1595
  %1818 = vmatmul.mubr.f32.gmra.mxu0 %v1594
  %v1819 = vpop.f32.mrf.mxu0
  %v1820 = vadd.f32 %v1730, %v1819
  %v1821 = vpop.f32.mrf.mxu0
  %1822 = vmatprep.mubr.f32.mxu0 %v1600
  %1823 = vmatmul.mubr.f32.gmra.mxu0 %v1599
  %v1824 = vpop.f32.mrf.mxu0
  %v1825 = vadd.f32 %v1735, %v1824
  %v1826 = vpop.f32.mrf.mxu0
  %1827 = vmatprep.mubr.f32.mxu0 %v1605
  %1828 = vmatmul.mubr.f32.gmra.mxu0 %v1604
  %v1829 = vpop.f32.mrf.mxu0
  %v1830 = vadd.f32 %v1740, %v1829
  %v1831 = vpop.f32.mrf.mxu0
  %1832 = vmatprep.mubr.f32.mxu0 %v1610
  %1833 = vmatmul.mubr.f32.gmra.mxu0 %v1609
  %v1834 = vpop.f32.mrf.mxu0
  %v1835 = vadd.f32 %v1745, %v1834
  %v1836 = vpop.f32.mrf.mxu0
  %1837 = vdwg.mxu0
  %1838 = vmatprep.subr.mxu0 0.0
  %1839 = vmatpush1.msra.mxu0 0.0
  %1840 = vmatprep.subr.mxu0 0.0
  %1841 = vmatpush1.msra.mxu0 0.0
  %1842 = vmatprep.subr.mxu0 0.0
  %1843 = vmatpush1.msra.mxu0 0.0
  %1844 = vmatprep.subr.mxu0 0.0
  %1845 = vmatpush1.msra.mxu0 0.0
  %1846 = vmatprep.subr.mxu0 0.0
  %1847 = vmatpush1.msra.mxu0 0.0
  %1848 = vmatprep.subr.mxu0 0.0
  %1849 = vmatpush1.msra.mxu0 %v1586
  %1850 = vmatprep.subr.mxu0 0.0
  %1851 = vmatpush1.msra.mxu0 %v1585
  %1852 = vmatprep.subr.mxu0 0.0
  %1853 = vmatpush1.msra.mxu0 %v1584
  %1854 = vmatprep.subr.mxu0 0.0
  %1855 = vmatpush1.msra.mxu0 %v1583
  %1856 = vmatprep.subr.mxu0 0.0
  %1857 = vmatpush1.msra.mxu0 %v1582
  %1858 = vmatprep.subr.mxu0 0.0
  %1859 = vmatpush1.msra.mxu0 %v1581
  %1860 = vmatprep.subr.mxu0 0.0
  %1861 = vmatpush1.msra.mxu0 %v1580
  %1862 = vmatprep.subr.mxu0 0.0
  %1863 = vmatpush1.msra.mxu0 %v1579
  %1864 = vmatprep.subr.mxu0 0.0
  %1865 = vmatpush1.msra.mxu0 %v1578
  %1866 = vmatprep.subr.mxu0 0.0
  %1867 = vmatpush1.msra.mxu0 %v1577
  %1868 = vmatprep.subr.mxu0 0.0
  %1869 = vmatpush1.msra.mxu0 %v1576
  %1870 = vmatprep.subr.mxu0 0.0
  %1871 = vmatpush2.msra.mxu0 0.0
  %1872 = vmatprep.subr.mxu0 0.0
  %1873 = vmatpush2.msra.mxu0 0.0
  %1874 = vmatprep.subr.mxu0 0.0
  %1875 = vmatpush2.msra.mxu0 0.0
  %1876 = vmatprep.subr.mxu0 0.0
  %1877 = vmatpush2.msra.mxu0 0.0
  %1878 = vmatprep.subr.mxu0 0.0
  %1879 = vmatpush2.msra.mxu0 0.0
  %1880 = vmatprep.subr.mxu0 0.0
  %1881 = vmatpush2.msra.mxu0 0.0
  %1882 = vmatprep.subr.mxu0 0.0
  %1883 = vmatpush2.msra.mxu0 0.0
  %1884 = vmatprep.subr.mxu0 0.0
  %1885 = vmatpush2.msra.mxu0 0.0
  %1886 = vmatprep.subr.mxu0 0.0
  %1887 = vmatpush2.msra.mxu0 0.0
  %1888 = vmatprep.subr.mxu0 0.0
  %1889 = vmatpush2.msra.mxu0 0.0
  %1890 = vmatprep.subr.mxu0 0.0
  %1891 = vmatpush2.msra.mxu0 0.0
  %1892 = vmatprep.subr.mxu0 0.0
  %1893 = vmatpush2.msra.mxu0 0.0
  %1894 = vmatprep.subr.mxu0 0.0
  %1895 = vmatpush2.msra.mxu0 0.0
  %1896 = vmatprep.subr.mxu0 0.0
  %1897 = vmatpush2.msra.mxu0 0.0
  %1898 = vmatprep.subr.mxu0 0.0
  %1899 = vmatpush2.msra.mxu0 0.0
  %1900 = vmatprep.subr.mxu0 0.0
  %1901 = vmatpush2.msra.mxu0 0.0
  %1902 = vmatprep.mubr.f32.mxu0 0.0
  %1903 = vmatmul.mubr.f32.gmra.mxu0 %v1644
  %v1904 = vpop.f32.mrf.mxu0
  %v1905 = vadd.f32 %v1815, %v1904
  %v1906 = vpop.f32.mrf.mxu0
  %1907 = vmatprep.mubr.f32.mxu0 0.0
  %1908 = vmatmul.mubr.f32.gmra.mxu0 %v1647
  %v1909 = vpop.f32.mrf.mxu0
  %v1910 = vadd.f32 %v1820, %v1909
  %v1911 = vpop.f32.mrf.mxu0
  %1912 = vmatprep.mubr.f32.mxu0 0.0
  %1913 = vmatmul.mubr.f32.gmra.mxu0 %v1650
  %v1914 = vpop.f32.mrf.mxu0
  %v1915 = vadd.f32 %v1825, %v1914
  %v1916 = vpop.f32.mrf.mxu0
  %1917 = vmatprep.mubr.f32.mxu0 0.0
  %1918 = vmatmul.mubr.f32.gmra.mxu0 %v1653
  %v1919 = vpop.f32.mrf.mxu0
  %v1920 = vadd.f32 %v1830, %v1919
  %v1921 = vpop.f32.mrf.mxu0
  %1922 = vmatprep.mubr.f32.mxu0 0.0
  %1923 = vmatmul.mubr.f32.gmra.mxu0 %v1656
  %v1924 = vpop.f32.mrf.mxu0
  %v1925 = vadd.f32 %v1835, %v1924
  %v1926 = vpop.f32.mrf.mxu0
  %1927 = vdwg.mxu0
  %vm1928 = vcmask 64512
  %1929 = vst.msk [vmem:[%s5] sm:$0xff] %vm1928, %v1905
  %1930 = vst.msk [vmem:[%s5 + $0x8] sm:$0xff] %vm1928, %v1910
  %1931 = vst.msk [vmem:[%s5 + $0x10] sm:$0xff] %vm1928, %v1915
  %1932 = vst.msk [vmem:[%s5 + $0x18] sm:$0xff] %vm1928, %v1920
  %1933 = vst.msk [vmem:[%s5 + $0x20] sm:$0xff] %vm1928, %v1925
  // Predicated region
  $region22: #{tpu_custom_call.1} parent=0 // pred_check
    _
  $region23: #{tpu_custom_call.1} parent=0 // pred_check_branch
    %1935 = sbr.rel (0) target = $region25
  $region24: #{tpu_custom_call.1} parent=0 // pred_region
    _
  $region25: #{tpu_custom_call.1} parent=0 // pred_fallthru
    _
  // Predicated region
  $region26: #{tpu_custom_call.1} parent=0 // pred_check
    _
  $region27: #{tpu_custom_call.1} parent=0 // pred_check_branch
    %1937 = sbr.rel (0) target = $region29
  $region28: #{tpu_custom_call.1} parent=0 // pred_region
    _
  $region29: #{tpu_custom_call.1} parent=0 // pred_fallthru
    _

</llo_original>
